<compile_context>
chip_gen: v6e
topology: v6e:2x2x1
jax: 0.10.0
libtpu: 0.0.40
codegen_flags: <defaults>
</compile_context>

<pallas_src>
import functools

import jax
import jax.numpy as jnp
from jax.experimental import pallas as pl
from jax.experimental.pallas import tpu as pltpu


def _layer_norm(x, gamma, beta, eps):
    mu = jnp.mean(x, axis=-1, keepdims=True)
    var = jnp.mean(jnp.square(x - mu), axis=-1, keepdims=True)
    return (x - mu) * jax.lax.rsqrt(var + eps) * gamma + beta


def sasrec_block_kernel(n_heads, d_k, ln_eps,
                        x_ref, mask_ref,
                        wq_ref, bq_ref, wk_ref, bk_ref, wv_ref, bv_ref,
                        wo_ref, bo_ref, ln1g_ref, ln1b_ref,
                        w1_ref, b1_ref, w2_ref, b2_ref, ln2g_ref, ln2b_ref,
                        wd_ref, bd_ref, wu_ref, bu_ref, lnfg_ref, lnfb_ref,
                        out_ref):
    bt, L, D = x_ref.shape
    H, dk = n_heads, d_k
    N = bt * L              # tokens handled by this grid step
    HB = H * bt             # merged (head, sequence) batch dim for attention

    xf = x_ref[...].reshape(N, D).astype(jnp.float32)   # residual path in f32
    x_bf = xf.astype(jnp.bfloat16)

    # ---- QKV projections, batched over heads (one einsum per projection) ----
    xb = jnp.broadcast_to(x_bf[None], (H, N, D))

    def _proj(w_ref, b_ref):
        return (jnp.einsum("hnd,hdk->hnk", xb, w_ref[...],
                           preferred_element_type=jnp.float32) + b_ref[...])

    q = _proj(wq_ref, bq_ref)   # (H, N, dk); 1/sqrt(dk) already folded into W_Q/b_Q
    k = _proj(wk_ref, bk_ref)
    v = _proj(wv_ref, bv_ref)

    q3 = q.reshape(HB, L, dk).astype(jnp.bfloat16)
    k3 = k.reshape(HB, L, dk).astype(jnp.bfloat16)
    v3 = v.reshape(HB, L, dk).astype(jnp.bfloat16)

    # ---- scaled dot-product attention (additive mask, f32 softmax) ----
    s = jnp.einsum("bqd,bkd->bqk", q3, k3,
                   preferred_element_type=jnp.float32)          # (HB, L, L)
    maskf = mask_ref[...].astype(jnp.float32)                    # (bt, L, L) of {0,1}
    bias = (maskf - 1.0) * jnp.float32(1e9)                      # 0 keep / -1e9 masked
    if H > 1:                                                    # head-major tiling
        bias = jnp.concatenate([bias] * H, axis=0)               # (HB, L, L)
    s = s + bias
    s = s - jnp.max(s, axis=-1, keepdims=True)
    p = jnp.exp(s)
    inv = pl.reciprocal(jnp.sum(p, axis=-1, keepdims=True), approx=True)

    ctx = jnp.einsum("bqk,bkd->bqd", p.astype(jnp.bfloat16), v3,
                     preferred_element_type=jnp.float32) * inv   # (HB, L, dk)

    # ---- output projection: sum_h ctx_h @ Wo_h (no concat / lane slicing) ----
    ctx_h = ctx.reshape(H, N, dk).astype(jnp.bfloat16)
    attn_h = jnp.einsum("hnk,hkm->hnm", ctx_h, wo_ref[...],
                        preferred_element_type=jnp.float32)      # (H, N, D)
    attn = attn_h[0]
    for h in range(1, H):          # H-1 full-slab adds; leading-dim slices are free
        attn = attn + attn_h[h]
    attn = attn + bo_ref[...]

    # ---- residual + LayerNorm (multi_head_attention.layer_norm) ----
    h1 = _layer_norm(xf + attn, ln1g_ref[...], ln1b_ref[...], ln_eps)

    # ---- position-wise feed-forward ----
    # TODO(synk): feed_forward.activate internals not shown; GELU (tanh approx)
    # assumed — switch to jnp.maximum(ff, 0) if the reference uses ReLU.
    ff = jnp.dot(h1.astype(jnp.bfloat16), w1_ref[...],
                 preferred_element_type=jnp.float32) + b1_ref[...]
    ff = jax.nn.gelu(ff, approximate=True)
    ff = jnp.dot(ff.astype(jnp.bfloat16), w2_ref[...],
                 preferred_element_type=jnp.float32) + b2_ref[...]
    residual_adapter = ff
    h2 = _layer_norm(h1 + ff, ln2g_ref[...], ln2b_ref[...], ln_eps)

    # ---- Pfeiffer adapter: down-proj -> ReLU -> up-proj (+ internal residual) ----
    down = jnp.dot(h2.astype(jnp.bfloat16), wd_ref[...],
                   preferred_element_type=jnp.float32) + bd_ref[...]
    down = jnp.maximum(down, 0.0)
    up = jnp.dot(down.astype(jnp.bfloat16), wu_ref[...],
                 preferred_element_type=jnp.float32) + bu_ref[...]
    adapted = h2 + up

    hidden = adapted + residual_adapter
    out = _layer_norm(hidden + h1, lnfg_ref[...], lnfb_ref[...], 1e-6)
    out_ref[...] = out.reshape(bt, L, D).astype(out_ref.dtype)


def _choose_block_b(B, L):
    # Aim for ~256 token rows per grid step to feed the MXU, but keep >= 2 grid
    # steps when B allows so both v7x TensorCores get work (axis is "parallel").
    target = max(1, 256 // max(L, 1))
    cap = max(1, B // 2) if B >= 2 else 1
    limit = max(1, min(target, cap))
    return max(d for d in range(1, B + 1) if B % d == 0 and d <= limit)


def sasrec_pfeiffer_block(x, mask, params, *, n_heads, d_k, ln_eps=1e-6,
                          block_b=None):
    B, L, D = x.shape
    H, dk = n_heads, d_k
    if block_b is None:
        block_b = _choose_block_b(B, L)
    assert B % block_b == 0
    grid = (B // block_b,)

    f32, bf16 = jnp.float32, jnp.bfloat16
    scale = 1.0 / float(dk) ** 0.5

    def _split_heads(w, b, fold_scale=False):
        # (D, H*dk) -> (H, D, dk);  (1, H*dk) -> (H, 1, dk)  (plain JAX, outside kernel)
        wh = w.reshape(D, H, dk).transpose(1, 0, 2)
        bh = b.reshape(1, H, dk).transpose(1, 0, 2)
        if fold_scale:
            wh = wh * scale
            bh = bh * scale
        return wh.astype(bf16), bh.astype(f32)

    wq_h, bq_h = _split_heads(params["wq"], params["bq"], fold_scale=True)
    wk_h, bk_h = _split_heads(params["wk"], params["bk"])
    wv_h, bv_h = _split_heads(params["wv"], params["bv"])
    wo_h = params["wo"].reshape(H, dk, D).astype(bf16)

    ordered = [
        wq_h, bq_h, wk_h, bk_h, wv_h, bv_h,
        wo_h, params["bo"].astype(f32),
        params["ln1_g"].astype(f32), params["ln1_b"].astype(f32),
        params["w1"].astype(bf16), params["b1"].astype(f32),
        params["w2"].astype(bf16), params["b2"].astype(f32),
        params["ln2_g"].astype(f32), params["ln2_b"].astype(f32),
        params["wd"].astype(bf16), params["bd"].astype(f32),
        params["wu"].astype(bf16), params["bu"].astype(f32),
        params["lnf_g"].astype(f32), params["lnf_b"].astype(f32),
    ]

    # Binarized bf16 mask: half the HBM traffic of streaming a float32 mask.
    mask_bf = (mask > 0).astype(bf16)

    def full_spec(a):
        nd = a.ndim
        return pl.BlockSpec(a.shape, lambda b, _nd=nd: (0,) * _nd)

    in_specs = [
        pl.BlockSpec((block_b, L, D), lambda b: (b, 0, 0)),   # activations tile
        pl.BlockSpec((block_b, L, L), lambda b: (b, 0, 0)),   # bf16 mask tile
    ] + [full_spec(a) for a in ordered]

    # Rough per-step VMEM estimate: double-buffered IO blocks + resident weights
    # + attention / FFN intermediates.  Only raise the scoped limit when needed.
    d_inner = params["w1"].shape[1]
    io_bytes = 2 * (2 * block_b * L * D * x.dtype.itemsize + block_b * L * L * 2)
    w_bytes = sum(int(a.size) * a.dtype.itemsize for a in ordered)
    act_bytes = (3 * H * block_b * L * L * 4           # scores / probs / bias
                 + 3 * H * block_b * L * dk * 6        # q/k/v (f32 + bf16)
                 + 8 * block_b * L * max(D, d_inner) * 4)
    est = io_bytes + w_bytes + act_bytes
    cp_kwargs = dict(dimension_semantics=("parallel",))
    if est > 24 * 1024 * 1024:
        # TODO(synk): for very long L on v7x (64 MiB VMEM) switch to flash-style
        # query tiling instead of materializing the full (L, L) score matrices.
        cp_kwargs["vmem_limit_bytes"] = int(min(1.5 * est, 96 * 1024 * 1024))

    kernel = functools.partial(sasrec_block_kernel, H, dk, ln_eps)

    return pl.pallas_call(
        kernel,
        grid=grid,
        in_specs=in_specs,
        out_specs=pl.BlockSpec((block_b, L, D), lambda b: (b, 0, 0)),
        out_shape=jax.ShapeDtypeStruct((B, L, D), x.dtype),
        compiler_params=pltpu.CompilerParams(**cp_kwargs),
    )(x, mask_bf, *ordered)


def _xavier_normal(key, shape):
    fan_in, fan_out = shape
    std = (2.0 / (fan_in + fan_out)) ** 0.5
    return std * jax.random.normal(key, shape, dtype=jnp.float32)


if __name__ == "__main__":
    # Small shapes consistent with the module's forward.
    B, L, D = 2, 8, 32          # batch, seq len, embedding_dim
    H, DK = 2, 16               # n_heads, d_k = d_v (H * DK == D)
    D_INNER = 64                # feed-forward inner dim
    DOWN = 8                    # adapter_down_size

    root = jax.random.PRNGKey(0)
    ks = jax.random.split(root, 12)

    x = jax.random.normal(ks[0], (B, L, D), dtype=jnp.float32)
    causal = jnp.tril(jnp.ones((L, L), jnp.float32))
    mask = jnp.broadcast_to(causal, (B, L, L))

    params = {
        "wq": _xavier_normal(ks[1], (D, H * DK)), "bq": jnp.zeros((1, H * DK), jnp.float32),
        "wk": _xavier_normal(ks[2], (D, H * DK)), "bk": jnp.zeros((1, H * DK), jnp.float32),
        "wv": _xavier_normal(ks[3], (D, H * DK)), "bv": jnp.zeros((1, H * DK), jnp.float32),
        "wo": _xavier_normal(ks[4], (H * DK, D)), "bo": jnp.zeros((1, D), jnp.float32),
        "ln1_g": jnp.ones((1, D), jnp.float32), "ln1_b": jnp.zeros((1, D), jnp.float32),
        "w1": _xavier_normal(ks[5], (D, D_INNER)), "b1": jnp.zeros((1, D_INNER), jnp.float32),
        "w2": _xavier_normal(ks[6], (D_INNER, D)), "b2": jnp.zeros((1, D), jnp.float32),
        "ln2_g": jnp.ones((1, D), jnp.float32), "ln2_b": jnp.zeros((1, D), jnp.float32),
        "wd": _xavier_normal(ks[7], (D, DOWN)), "bd": jnp.zeros((1, DOWN), jnp.float32),
        "wu": _xavier_normal(ks[8], (DOWN, D)), "bu": jnp.zeros((1, D), jnp.float32),
        "lnf_g": jnp.ones((1, D), jnp.float32), "lnf_b": jnp.zeros((1, D), jnp.float32),
    }

    out = sasrec_pfeiffer_block(x, mask, params, n_heads=H, d_k=DK)
    out = jax.block_until_ready(out)
    assert out.shape == (B, L, D)
    assert bool(jnp.all(jnp.isfinite(out)))
    print("KERNEL_OK")
</pallas_src>

<mosaic_0001>
module attributes {stable_mosaic.version = 11 : i64} {
  func.func @sasrec_block_kernel(%arg0: i32, %arg1: memref<1x8x32xf32, #tpu.memory_space<vmem>>, %arg2: memref<1x8x8xbf16, #tpu.memory_space<vmem>>, %arg3: memref<2x32x16xbf16, #tpu.memory_space<vmem>>, %arg4: memref<2x1x16xf32, #tpu.memory_space<vmem>>, %arg5: memref<2x32x16xbf16, #tpu.memory_space<vmem>>, %arg6: memref<2x1x16xf32, #tpu.memory_space<vmem>>, %arg7: memref<2x32x16xbf16, #tpu.memory_space<vmem>>, %arg8: memref<2x1x16xf32, #tpu.memory_space<vmem>>, %arg9: memref<2x16x32xbf16, #tpu.memory_space<vmem>>, %arg10: memref<1x32xf32, #tpu.memory_space<vmem>>, %arg11: memref<1x32xf32, #tpu.memory_space<vmem>>, %arg12: memref<1x32xf32, #tpu.memory_space<vmem>>, %arg13: memref<32x64xbf16, #tpu.memory_space<vmem>>, %arg14: memref<1x64xf32, #tpu.memory_space<vmem>>, %arg15: memref<64x32xbf16, #tpu.memory_space<vmem>>, %arg16: memref<1x32xf32, #tpu.memory_space<vmem>>, %arg17: memref<1x32xf32, #tpu.memory_space<vmem>>, %arg18: memref<1x32xf32, #tpu.memory_space<vmem>>, %arg19: memref<32x8xbf16, #tpu.memory_space<vmem>>, %arg20: memref<1x8xf32, #tpu.memory_space<vmem>>, %arg21: memref<8x32xbf16, #tpu.memory_space<vmem>>, %arg22: memref<1x32xf32, #tpu.memory_space<vmem>>, %arg23: memref<1x32xf32, #tpu.memory_space<vmem>>, %arg24: memref<1x32xf32, #tpu.memory_space<vmem>>, %arg25: memref<1x8x32xf32, #tpu.memory_space<vmem>>) attributes {dimension_semantics = [#tpu.dimension_semantics<parallel>], iteration_bounds = array<i64: 2>, scalar_prefetch = 0 : i64, scratch_operands = 0 : i64, tpu.core_type = #tpu.core_type<tc>, window_params = [{transform_indices = @transform_0, window_bounds = array<i64: 1, 8, 32>}, {transform_indices = @transform_1, window_bounds = array<i64: 1, 8, 8>}, {pipeline_mode = #tpu.pipeline_mode<synchronous>, transform_indices = @transform_2, window_bounds = array<i64: 2, 32, 16>}, {pipeline_mode = #tpu.pipeline_mode<synchronous>, transform_indices = @transform_3, window_bounds = array<i64: 2, 1, 16>}, {pipeline_mode = #tpu.pipeline_mode<synchronous>, transform_indices = @transform_4, window_bounds = array<i64: 2, 32, 16>}, {pipeline_mode = #tpu.pipeline_mode<synchronous>, transform_indices = @transform_5, window_bounds = array<i64: 2, 1, 16>}, {pipeline_mode = #tpu.pipeline_mode<synchronous>, transform_indices = @transform_6, window_bounds = array<i64: 2, 32, 16>}, {pipeline_mode = #tpu.pipeline_mode<synchronous>, transform_indices = @transform_7, window_bounds = array<i64: 2, 1, 16>}, {pipeline_mode = #tpu.pipeline_mode<synchronous>, transform_indices = @transform_8, window_bounds = array<i64: 2, 16, 32>}, {pipeline_mode = #tpu.pipeline_mode<synchronous>, transform_indices = @transform_9, window_bounds = array<i64: 1, 32>}, {pipeline_mode = #tpu.pipeline_mode<synchronous>, transform_indices = @transform_10, window_bounds = array<i64: 1, 32>}, {pipeline_mode = #tpu.pipeline_mode<synchronous>, transform_indices = @transform_11, window_bounds = array<i64: 1, 32>}, {pipeline_mode = #tpu.pipeline_mode<synchronous>, transform_indices = @transform_12, window_bounds = array<i64: 32, 64>}, {pipeline_mode = #tpu.pipeline_mode<synchronous>, transform_indices = @transform_13, window_bounds = array<i64: 1, 64>}, {pipeline_mode = #tpu.pipeline_mode<synchronous>, transform_indices = @transform_14, window_bounds = array<i64: 64, 32>}, {pipeline_mode = #tpu.pipeline_mode<synchronous>, transform_indices = @transform_15, window_bounds = array<i64: 1, 32>}, {pipeline_mode = #tpu.pipeline_mode<synchronous>, transform_indices = @transform_16, window_bounds = array<i64: 1, 32>}, {pipeline_mode = #tpu.pipeline_mode<synchronous>, transform_indices = @transform_17, window_bounds = array<i64: 1, 32>}, {pipeline_mode = #tpu.pipeline_mode<synchronous>, transform_indices = @transform_18, window_bounds = array<i64: 32, 8>}, {pipeline_mode = #tpu.pipeline_mode<synchronous>, transform_indices = @transform_19, window_bounds = array<i64: 1, 8>}, {pipeline_mode = #tpu.pipeline_mode<synchronous>, transform_indices = @transform_20, window_bounds = array<i64: 8, 32>}, {pipeline_mode = #tpu.pipeline_mode<synchronous>, transform_indices = @transform_21, window_bounds = array<i64: 1, 32>}, {pipeline_mode = #tpu.pipeline_mode<synchronous>, transform_indices = @transform_22, window_bounds = array<i64: 1, 32>}, {pipeline_mode = #tpu.pipeline_mode<synchronous>, transform_indices = @transform_23, window_bounds = array<i64: 1, 32>}, {transform_indices = @transform_24, window_bounds = array<i64: 1, 8, 32>}]} {
    %c0 = arith.constant 0 : index
    %c0_0 = arith.constant 0 : index
    %c0_1 = arith.constant 0 : index
    %0 = vector.load %arg1[%c0, %c0_0, %c0_1] : memref<1x8x32xf32, #tpu.memory_space<vmem>>, vector<1x8x32xf32>
    %1 = vector.shape_cast %0 : vector<1x8x32xf32> to vector<8x32xf32>
    %2 = arith.truncf %1 : vector<8x32xf32> to vector<8x32xbf16>
    %3 = vector.shape_cast %2 : vector<8x32xbf16> to vector<1x8x32xbf16>
    %4 = vector.shape_cast %3 : vector<1x8x32xbf16> to vector<1x8x32xbf16>
    %5 = vector.broadcast %4 : vector<1x8x32xbf16> to vector<2x8x32xbf16>
    %c0_2 = arith.constant 0 : index
    %c0_3 = arith.constant 0 : index
    %c0_4 = arith.constant 0 : index
    %6 = vector.load %arg3[%c0_2, %c0_3, %c0_4] : memref<2x32x16xbf16, #tpu.memory_space<vmem>>, vector<2x32x16xbf16>
    "tpu.trace_start"() <{level = 10 : i32, message = "hnd,hdk->hnk"}> : () -> ()
    %cst = arith.constant dense<0.000000e+00> : vector<2x8x16xf32>
    %7 = tpu.matmul %5, %6, %cst {dimension_numbers = #tpu.dot_dimension_numbers<[2], [1], [1], [2], [0, 0, 0, 1, 1, 2], [0], [0]>} : vector<2x8x32xbf16>, vector<2x32x16xbf16>, vector<2x8x16xf32> -> vector<2x8x16xf32>
    "tpu.trace_stop"() : () -> ()
    %c0_5 = arith.constant 0 : index
    %c0_6 = arith.constant 0 : index
    %c0_7 = arith.constant 0 : index
    %8 = vector.load %arg4[%c0_5, %c0_6, %c0_7] : memref<2x1x16xf32, #tpu.memory_space<vmem>>, vector<2x1x16xf32>
    %9 = vector.broadcast %8 : vector<2x1x16xf32> to vector<2x8x16xf32>
    %10 = arith.addf %7, %9 : vector<2x8x16xf32>
    %c0_8 = arith.constant 0 : index
    %c0_9 = arith.constant 0 : index
    %c0_10 = arith.constant 0 : index
    %11 = vector.load %arg5[%c0_8, %c0_9, %c0_10] : memref<2x32x16xbf16, #tpu.memory_space<vmem>>, vector<2x32x16xbf16>
    "tpu.trace_start"() <{level = 10 : i32, message = "hnd,hdk->hnk"}> : () -> ()
    %cst_11 = arith.constant dense<0.000000e+00> : vector<2x8x16xf32>
    %12 = tpu.matmul %5, %11, %cst_11 {dimension_numbers = #tpu.dot_dimension_numbers<[2], [1], [1], [2], [0, 0, 0, 1, 1, 2], [0], [0]>} : vector<2x8x32xbf16>, vector<2x32x16xbf16>, vector<2x8x16xf32> -> vector<2x8x16xf32>
    "tpu.trace_stop"() : () -> ()
    %c0_12 = arith.constant 0 : index
    %c0_13 = arith.constant 0 : index
    %c0_14 = arith.constant 0 : index
    %13 = vector.load %arg6[%c0_12, %c0_13, %c0_14] : memref<2x1x16xf32, #tpu.memory_space<vmem>>, vector<2x1x16xf32>
    %14 = vector.broadcast %13 : vector<2x1x16xf32> to vector<2x8x16xf32>
    %15 = arith.addf %12, %14 : vector<2x8x16xf32>
    %c0_15 = arith.constant 0 : index
    %c0_16 = arith.constant 0 : index
    %c0_17 = arith.constant 0 : index
    %16 = vector.load %arg7[%c0_15, %c0_16, %c0_17] : memref<2x32x16xbf16, #tpu.memory_space<vmem>>, vector<2x32x16xbf16>
    "tpu.trace_start"() <{level = 10 : i32, message = "hnd,hdk->hnk"}> : () -> ()
    %cst_18 = arith.constant dense<0.000000e+00> : vector<2x8x16xf32>
    %17 = tpu.matmul %5, %16, %cst_18 {dimension_numbers = #tpu.dot_dimension_numbers<[2], [1], [1], [2], [0, 0, 0, 1, 1, 2], [0], [0]>} : vector<2x8x32xbf16>, vector<2x32x16xbf16>, vector<2x8x16xf32> -> vector<2x8x16xf32>
    "tpu.trace_stop"() : () -> ()
    %c0_19 = arith.constant 0 : index
    %c0_20 = arith.constant 0 : index
    %c0_21 = arith.constant 0 : index
    %18 = vector.load %arg8[%c0_19, %c0_20, %c0_21] : memref<2x1x16xf32, #tpu.memory_space<vmem>>, vector<2x1x16xf32>
    %19 = vector.broadcast %18 : vector<2x1x16xf32> to vector<2x8x16xf32>
    %20 = arith.addf %17, %19 : vector<2x8x16xf32>
    %21 = arith.truncf %10 : vector<2x8x16xf32> to vector<2x8x16xbf16>
    %22 = arith.truncf %15 : vector<2x8x16xf32> to vector<2x8x16xbf16>
    %23 = arith.truncf %20 : vector<2x8x16xf32> to vector<2x8x16xbf16>
    "tpu.trace_start"() <{level = 10 : i32, message = "bqd,bkd->bqk"}> : () -> ()
    %cst_22 = arith.constant dense<0.000000e+00> : vector<2x8x8xf32>
    %24 = tpu.matmul %21, %22, %cst_22 {dimension_numbers = #tpu.dot_dimension_numbers<[2], [2], [1], [1], [0, 0, 0, 1, 1, 1], [0], [0]>} : vector<2x8x16xbf16>, vector<2x8x16xbf16>, vector<2x8x8xf32> -> vector<2x8x8xf32>
    "tpu.trace_stop"() : () -> ()
    %c0_23 = arith.constant 0 : index
    %c0_24 = arith.constant 0 : index
    %c0_25 = arith.constant 0 : index
    %25 = vector.load %arg2[%c0_23, %c0_24, %c0_25] : memref<1x8x8xbf16, #tpu.memory_space<vmem>>, vector<1x8x8xbf16>
    %26 = arith.extf %25 : vector<1x8x8xbf16> to vector<1x8x8xf32>
    %cst_26 = arith.constant 1.000000e+00 : f32
    %27 = vector.broadcast %cst_26 : f32 to vector<1x8x8xf32>
    %28 = arith.subf %26, %27 : vector<1x8x8xf32>
    %cst_27 = arith.constant 1.000000e+09 : f32
    %29 = vector.broadcast %cst_27 : f32 to vector<1x8x8xf32>
    %30 = arith.mulf %28, %29 : vector<1x8x8xf32>
    %31 = tpu.concatenate %30, %30 in 0 : vector<1x8x8xf32>, vector<1x8x8xf32> -> vector<2x8x8xf32>
    %32 = arith.addf %24, %31 : vector<2x8x8xf32>
    %cst_28 = arith.constant dense<0xFF800000> : vector<2x8xf32>
    %33 = vector.multi_reduction <maximumf>, %32, %cst_28 [2] : vector<2x8x8xf32> to vector<2x8xf32>
    %34 = vector.shape_cast %33 : vector<2x8xf32> to vector<2x8x1xf32>
    %35 = vector.broadcast %34 : vector<2x8x1xf32> to vector<2x8x8xf32>
    %36 = arith.subf %32, %35 : vector<2x8x8xf32>
    %37 = math.exp %36 : vector<2x8x8xf32>
    %cst_29 = arith.constant dense<0.000000e+00> : vector<2x8xf32>
    %38 = vector.multi_reduction <add>, %37, %cst_29 [2] : vector<2x8x8xf32> to vector<2x8xf32>
    %39 = vector.shape_cast %38 : vector<2x8xf32> to vector<2x8x1xf32>
    %40 = tpu.reciprocal %39 {approx = true} : vector<2x8x1xf32> -> vector<2x8x1xf32>
    %41 = arith.truncf %37 : vector<2x8x8xf32> to vector<2x8x8xbf16>
    "tpu.trace_start"() <{level = 10 : i32, message = "bqk,bkd->bqd"}> : () -> ()
    %cst_30 = arith.constant dense<0.000000e+00> : vector<2x8x16xf32>
    %42 = tpu.matmul %41, %23, %cst_30 {dimension_numbers = #tpu.dot_dimension_numbers<[2], [1], [1], [2], [0, 0, 0, 1, 1, 2], [0], [0]>} : vector<2x8x8xbf16>, vector<2x8x16xbf16>, vector<2x8x16xf32> -> vector<2x8x16xf32>
    "tpu.trace_stop"() : () -> ()
    %43 = vector.broadcast %40 : vector<2x8x1xf32> to vector<2x8x16xf32>
    %44 = arith.mulf %42, %43 : vector<2x8x16xf32>
    %45 = arith.truncf %44 : vector<2x8x16xf32> to vector<2x8x16xbf16>
    %c0_31 = arith.constant 0 : index
    %c0_32 = arith.constant 0 : index
    %c0_33 = arith.constant 0 : index
    %46 = vector.load %arg9[%c0_31, %c0_32, %c0_33] : memref<2x16x32xbf16, #tpu.memory_space<vmem>>, vector<2x16x32xbf16>
    "tpu.trace_start"() <{level = 10 : i32, message = "hnk,hkm->hnm"}> : () -> ()
    %cst_34 = arith.constant dense<0.000000e+00> : vector<2x8x32xf32>
    %47 = tpu.matmul %45, %46, %cst_34 {dimension_numbers = #tpu.dot_dimension_numbers<[2], [1], [1], [2], [0, 0, 0, 1, 1, 2], [0], [0]>} : vector<2x8x16xbf16>, vector<2x16x32xbf16>, vector<2x8x32xf32> -> vector<2x8x32xf32>
    "tpu.trace_stop"() : () -> ()
    %48 = vector.extract_strided_slice %47 {offsets = [0, 0, 0], sizes = [1, 8, 32], strides = [1, 1, 1]} : vector<2x8x32xf32> to vector<1x8x32xf32>
    %49 = vector.shape_cast %48 : vector<1x8x32xf32> to vector<8x32xf32>
    %50 = vector.extract_strided_slice %47 {offsets = [1, 0, 0], sizes = [1, 8, 32], strides = [1, 1, 1]} : vector<2x8x32xf32> to vector<1x8x32xf32>
    %51 = vector.shape_cast %50 : vector<1x8x32xf32> to vector<8x32xf32>
    %52 = arith.addf %49, %51 : vector<8x32xf32>
    %c0_35 = arith.constant 0 : index
    %c0_36 = arith.constant 0 : index
    %53 = vector.load %arg10[%c0_35, %c0_36] : memref<1x32xf32, #tpu.memory_space<vmem>>, vector<1x32xf32>
    %54 = vector.broadcast %53 : vector<1x32xf32> to vector<8x32xf32>
    %55 = arith.addf %52, %54 : vector<8x32xf32>
    %56 = arith.addf %1, %55 : vector<8x32xf32>
    %c0_37 = arith.constant 0 : index
    %c0_38 = arith.constant 0 : index
    %57 = vector.load %arg11[%c0_37, %c0_38] : memref<1x32xf32, #tpu.memory_space<vmem>>, vector<1x32xf32>
    %c0_39 = arith.constant 0 : index
    %c0_40 = arith.constant 0 : index
    %58 = vector.load %arg12[%c0_39, %c0_40] : memref<1x32xf32, #tpu.memory_space<vmem>>, vector<1x32xf32>
    %cst_41 = arith.constant dense<0.000000e+00> : vector<8xf32>
    %59 = vector.multi_reduction <add>, %56, %cst_41 [1] : vector<8x32xf32> to vector<8xf32>
    %60 = vector.shape_cast %59 : vector<8xf32> to vector<8x1xf32>
    %cst_42 = arith.constant 3.200000e+01 : f32
    %61 = vector.broadcast %cst_42 : f32 to vector<8x1xf32>
    %62 = arith.divf %60, %61 : vector<8x1xf32>
    %63 = vector.broadcast %62 : vector<8x1xf32> to vector<8x32xf32>
    %64 = arith.subf %56, %63 : vector<8x32xf32>
    %65 = arith.mulf %64, %64 : vector<8x32xf32>
    %cst_43 = arith.constant dense<0.000000e+00> : vector<8xf32>
    %66 = vector.multi_reduction <add>, %65, %cst_43 [1] : vector<8x32xf32> to vector<8xf32>
    %67 = vector.shape_cast %66 : vector<8xf32> to vector<8x1xf32>
    %cst_44 = arith.constant 3.200000e+01 : f32
    %68 = vector.broadcast %cst_44 : f32 to vector<8x1xf32>
    %69 = arith.divf %67, %68 : vector<8x1xf32>
    %70 = vector.broadcast %62 : vector<8x1xf32> to vector<8x32xf32>
    %71 = arith.subf %56, %70 : vector<8x32xf32>
    %cst_45 = arith.constant 9.99999997E-7 : f32
    %72 = vector.broadcast %cst_45 : f32 to vector<8x1xf32>
    %73 = arith.addf %69, %72 : vector<8x1xf32>
    %74 = math.rsqrt %73 : vector<8x1xf32>
    %75 = vector.broadcast %74 : vector<8x1xf32> to vector<8x32xf32>
    %76 = arith.mulf %71, %75 : vector<8x32xf32>
    %77 = vector.broadcast %57 : vector<1x32xf32> to vector<8x32xf32>
    %78 = arith.mulf %76, %77 : vector<8x32xf32>
    %79 = vector.broadcast %58 : vector<1x32xf32> to vector<8x32xf32>
    %80 = arith.addf %78, %79 : vector<8x32xf32>
    %81 = arith.truncf %80 : vector<8x32xf32> to vector<8x32xbf16>
    %c0_46 = arith.constant 0 : index
    %c0_47 = arith.constant 0 : index
    %82 = vector.load %arg13[%c0_46, %c0_47] : memref<32x64xbf16, #tpu.memory_space<vmem>>, vector<32x64xbf16>
    %cst_48 = arith.constant dense<0.000000e+00> : vector<8x64xf32>
    %83 = tpu.matmul %81, %82, %cst_48 {dimension_numbers = #tpu.dot_dimension_numbers<[1], [0], [0], [1], [0, 0, 1, 1], [], []>} : vector<8x32xbf16>, vector<32x64xbf16>, vector<8x64xf32> -> vector<8x64xf32>
    %c0_49 = arith.constant 0 : index
    %c0_50 = arith.constant 0 : index
    %84 = vector.load %arg14[%c0_49, %c0_50] : memref<1x64xf32, #tpu.memory_space<vmem>>, vector<1x64xf32>
    %85 = vector.broadcast %84 : vector<1x64xf32> to vector<8x64xf32>
    %86 = arith.addf %83, %85 : vector<8x64xf32>
    %87 = arith.mulf %86, %86 : vector<8x64xf32>
    %88 = arith.mulf %86, %87 : vector<8x64xf32>
    %cst_51 = arith.constant 4.471500e-02 : f32
    %89 = vector.broadcast %cst_51 : f32 to vector<8x64xf32>
    %90 = arith.mulf %89, %88 : vector<8x64xf32>
    %91 = arith.addf %86, %90 : vector<8x64xf32>
    %cst_52 = arith.constant 0.797884583 : f32
    %92 = vector.broadcast %cst_52 : f32 to vector<8x64xf32>
    %93 = arith.mulf %92, %91 : vector<8x64xf32>
    %94 = math.tanh %93 : vector<8x64xf32>
    %cst_53 = arith.constant 1.000000e+00 : f32
    %95 = vector.broadcast %cst_53 : f32 to vector<8x64xf32>
    %96 = arith.addf %95, %94 : vector<8x64xf32>
    %cst_54 = arith.constant 5.000000e-01 : f32
    %97 = vector.broadcast %cst_54 : f32 to vector<8x64xf32>
    %98 = arith.mulf %97, %96 : vector<8x64xf32>
    %99 = arith.mulf %86, %98 : vector<8x64xf32>
    %100 = arith.truncf %99 : vector<8x64xf32> to vector<8x64xbf16>
    %c0_55 = arith.constant 0 : index
    %c0_56 = arith.constant 0 : index
    %101 = vector.load %arg15[%c0_55, %c0_56] : memref<64x32xbf16, #tpu.memory_space<vmem>>, vector<64x32xbf16>
    %cst_57 = arith.constant dense<0.000000e+00> : vector<8x32xf32>
    %102 = tpu.matmul %100, %101, %cst_57 {dimension_numbers = #tpu.dot_dimension_numbers<[1], [0], [0], [1], [0, 0, 1, 1], [], []>} : vector<8x64xbf16>, vector<64x32xbf16>, vector<8x32xf32> -> vector<8x32xf32>
    %c0_58 = arith.constant 0 : index
    %c0_59 = arith.constant 0 : index
    %103 = vector.load %arg16[%c0_58, %c0_59] : memref<1x32xf32, #tpu.memory_space<vmem>>, vector<1x32xf32>
    %104 = vector.broadcast %103 : vector<1x32xf32> to vector<8x32xf32>
    %105 = arith.addf %102, %104 : vector<8x32xf32>
    %106 = arith.addf %80, %105 : vector<8x32xf32>
    %c0_60 = arith.constant 0 : index
    %c0_61 = arith.constant 0 : index
    %107 = vector.load %arg17[%c0_60, %c0_61] : memref<1x32xf32, #tpu.memory_space<vmem>>, vector<1x32xf32>
    %c0_62 = arith.constant 0 : index
    %c0_63 = arith.constant 0 : index
    %108 = vector.load %arg18[%c0_62, %c0_63] : memref<1x32xf32, #tpu.memory_space<vmem>>, vector<1x32xf32>
    %cst_64 = arith.constant dense<0.000000e+00> : vector<8xf32>
    %109 = vector.multi_reduction <add>, %106, %cst_64 [1] : vector<8x32xf32> to vector<8xf32>
    %110 = vector.shape_cast %109 : vector<8xf32> to vector<8x1xf32>
    %cst_65 = arith.constant 3.200000e+01 : f32
    %111 = vector.broadcast %cst_65 : f32 to vector<8x1xf32>
    %112 = arith.divf %110, %111 : vector<8x1xf32>
    %113 = vector.broadcast %112 : vector<8x1xf32> to vector<8x32xf32>
    %114 = arith.subf %106, %113 : vector<8x32xf32>
    %115 = arith.mulf %114, %114 : vector<8x32xf32>
    %cst_66 = arith.constant dense<0.000000e+00> : vector<8xf32>
    %116 = vector.multi_reduction <add>, %115, %cst_66 [1] : vector<8x32xf32> to vector<8xf32>
    %117 = vector.shape_cast %116 : vector<8xf32> to vector<8x1xf32>
    %cst_67 = arith.constant 3.200000e+01 : f32
    %118 = vector.broadcast %cst_67 : f32 to vector<8x1xf32>
    %119 = arith.divf %117, %118 : vector<8x1xf32>
    %120 = vector.broadcast %112 : vector<8x1xf32> to vector<8x32xf32>
    %121 = arith.subf %106, %120 : vector<8x32xf32>
    %cst_68 = arith.constant 9.99999997E-7 : f32
    %122 = vector.broadcast %cst_68 : f32 to vector<8x1xf32>
    %123 = arith.addf %119, %122 : vector<8x1xf32>
    %124 = math.rsqrt %123 : vector<8x1xf32>
    %125 = vector.broadcast %124 : vector<8x1xf32> to vector<8x32xf32>
    %126 = arith.mulf %121, %125 : vector<8x32xf32>
    %127 = vector.broadcast %107 : vector<1x32xf32> to vector<8x32xf32>
    %128 = arith.mulf %126, %127 : vector<8x32xf32>
    %129 = vector.broadcast %108 : vector<1x32xf32> to vector<8x32xf32>
    %130 = arith.addf %128, %129 : vector<8x32xf32>
    %131 = arith.truncf %130 : vector<8x32xf32> to vector<8x32xbf16>
    %c0_69 = arith.constant 0 : index
    %c0_70 = arith.constant 0 : index
    %132 = vector.load %arg19[%c0_69, %c0_70] : memref<32x8xbf16, #tpu.memory_space<vmem>>, vector<32x8xbf16>
    %cst_71 = arith.constant dense<0.000000e+00> : vector<8x8xf32>
    %133 = tpu.matmul %131, %132, %cst_71 {dimension_numbers = #tpu.dot_dimension_numbers<[1], [0], [0], [1], [0, 0, 1, 1], [], []>} : vector<8x32xbf16>, vector<32x8xbf16>, vector<8x8xf32> -> vector<8x8xf32>
    %c0_72 = arith.constant 0 : index
    %c0_73 = arith.constant 0 : index
    %134 = vector.load %arg20[%c0_72, %c0_73] : memref<1x8xf32, #tpu.memory_space<vmem>>, vector<1x8xf32>
    %135 = vector.broadcast %134 : vector<1x8xf32> to vector<8x8xf32>
    %136 = arith.addf %133, %135 : vector<8x8xf32>
    %cst_74 = arith.constant 0.000000e+00 : f32
    %137 = vector.broadcast %cst_74 : f32 to vector<8x8xf32>
    %138 = arith.maximumf %136, %137 : vector<8x8xf32>
    %139 = arith.truncf %138 : vector<8x8xf32> to vector<8x8xbf16>
    %c0_75 = arith.constant 0 : index
    %c0_76 = arith.constant 0 : index
    %140 = vector.load %arg21[%c0_75, %c0_76] : memref<8x32xbf16, #tpu.memory_space<vmem>>, vector<8x32xbf16>
    %cst_77 = arith.constant dense<0.000000e+00> : vector<8x32xf32>
    %141 = tpu.matmul %139, %140, %cst_77 {dimension_numbers = #tpu.dot_dimension_numbers<[1], [0], [0], [1], [0, 0, 1, 1], [], []>} : vector<8x8xbf16>, vector<8x32xbf16>, vector<8x32xf32> -> vector<8x32xf32>
    %c0_78 = arith.constant 0 : index
    %c0_79 = arith.constant 0 : index
    %142 = vector.load %arg22[%c0_78, %c0_79] : memref<1x32xf32, #tpu.memory_space<vmem>>, vector<1x32xf32>
    %143 = vector.broadcast %142 : vector<1x32xf32> to vector<8x32xf32>
    %144 = arith.addf %141, %143 : vector<8x32xf32>
    %145 = arith.addf %130, %144 : vector<8x32xf32>
    %146 = arith.addf %145, %105 : vector<8x32xf32>
    %147 = arith.addf %146, %80 : vector<8x32xf32>
    %c0_80 = arith.constant 0 : index
    %c0_81 = arith.constant 0 : index
    %148 = vector.load %arg23[%c0_80, %c0_81] : memref<1x32xf32, #tpu.memory_space<vmem>>, vector<1x32xf32>
    %c0_82 = arith.constant 0 : index
    %c0_83 = arith.constant 0 : index
    %149 = vector.load %arg24[%c0_82, %c0_83] : memref<1x32xf32, #tpu.memory_space<vmem>>, vector<1x32xf32>
    %cst_84 = arith.constant dense<0.000000e+00> : vector<8xf32>
    %150 = vector.multi_reduction <add>, %147, %cst_84 [1] : vector<8x32xf32> to vector<8xf32>
    %151 = vector.shape_cast %150 : vector<8xf32> to vector<8x1xf32>
    %cst_85 = arith.constant 3.200000e+01 : f32
    %152 = vector.broadcast %cst_85 : f32 to vector<8x1xf32>
    %153 = arith.divf %151, %152 : vector<8x1xf32>
    %154 = vector.broadcast %153 : vector<8x1xf32> to vector<8x32xf32>
    %155 = arith.subf %147, %154 : vector<8x32xf32>
    %156 = arith.mulf %155, %155 : vector<8x32xf32>
    %cst_86 = arith.constant dense<0.000000e+00> : vector<8xf32>
    %157 = vector.multi_reduction <add>, %156, %cst_86 [1] : vector<8x32xf32> to vector<8xf32>
    %158 = vector.shape_cast %157 : vector<8xf32> to vector<8x1xf32>
    %cst_87 = arith.constant 3.200000e+01 : f32
    %159 = vector.broadcast %cst_87 : f32 to vector<8x1xf32>
    %160 = arith.divf %158, %159 : vector<8x1xf32>
    %161 = vector.broadcast %153 : vector<8x1xf32> to vector<8x32xf32>
    %162 = arith.subf %147, %161 : vector<8x32xf32>
    %cst_88 = arith.constant 9.99999997E-7 : f32
    %163 = vector.broadcast %cst_88 : f32 to vector<8x1xf32>
    %164 = arith.addf %160, %163 : vector<8x1xf32>
    %165 = math.rsqrt %164 : vector<8x1xf32>
    %166 = vector.broadcast %165 : vector<8x1xf32> to vector<8x32xf32>
    %167 = arith.mulf %162, %166 : vector<8x32xf32>
    %168 = vector.broadcast %148 : vector<1x32xf32> to vector<8x32xf32>
    %169 = arith.mulf %167, %168 : vector<8x32xf32>
    %170 = vector.broadcast %149 : vector<1x32xf32> to vector<8x32xf32>
    %171 = arith.addf %169, %170 : vector<8x32xf32>
    %172 = vector.shape_cast %171 : vector<8x32xf32> to vector<1x8x32xf32>
    %c0_89 = arith.constant 0 : index
    %c0_90 = arith.constant 0 : index
    %c0_91 = arith.constant 0 : index
    %173 = vector.load %arg25[%c0_89, %c0_90, %c0_91] : memref<1x8x32xf32, #tpu.memory_space<vmem>>, vector<1x8x32xf32>
    tpu.vector_store %arg25[%c0_89, %c0_90, %c0_91], %172 {strides = array<i32>} : memref<1x8x32xf32, #tpu.memory_space<vmem>>, vector<1x8x32xf32>,
    return
  }
  func.func @transform_0(%arg0: i32) -> (i32, i32, i32) {
    %c0_i32 = arith.constant 0 : i32
    %c0_i32_0 = arith.constant 0 : i32
    %c0_i32_1 = arith.constant 0 : i32
    return %arg0, %c0_i32, %c0_i32_0 : i32, i32, i32
  }
  func.func @transform_1(%arg0: i32) -> (i32, i32, i32) {
    %c0_i32 = arith.constant 0 : i32
    %c0_i32_0 = arith.constant 0 : i32
    %c0_i32_1 = arith.constant 0 : i32
    return %arg0, %c0_i32, %c0_i32_0 : i32, i32, i32
  }
  func.func @transform_2(%arg0: i32) -> (i32, i32, i32) {
    %c0_i32 = arith.constant 0 : i32
    %c0_i32_0 = arith.constant 0 : i32
    %c0_i32_1 = arith.constant 0 : i32
    %c0_i32_2 = arith.constant 0 : i32
    return %c0_i32, %c0_i32_0, %c0_i32_1 : i32, i32, i32
  }
  func.func @transform_3(%arg0: i32) -> (i32, i32, i32) {
    %c0_i32 = arith.constant 0 : i32
    %c0_i32_0 = arith.constant 0 : i32
    %c0_i32_1 = arith.constant 0 : i32
    %c0_i32_2 = arith.constant 0 : i32
    return %c0_i32, %c0_i32_0, %c0_i32_1 : i32, i32, i32
  }
  func.func @transform_4(%arg0: i32) -> (i32, i32, i32) {
    %c0_i32 = arith.constant 0 : i32
    %c0_i32_0 = arith.constant 0 : i32
    %c0_i32_1 = arith.constant 0 : i32
    %c0_i32_2 = arith.constant 0 : i32
    return %c0_i32, %c0_i32_0, %c0_i32_1 : i32, i32, i32
  }
  func.func @transform_5(%arg0: i32) -> (i32, i32, i32) {
    %c0_i32 = arith.constant 0 : i32
    %c0_i32_0 = arith.constant 0 : i32
    %c0_i32_1 = arith.constant 0 : i32
    %c0_i32_2 = arith.constant 0 : i32
    return %c0_i32, %c0_i32_0, %c0_i32_1 : i32, i32, i32
  }
  func.func @transform_6(%arg0: i32) -> (i32, i32, i32) {
    %c0_i32 = arith.constant 0 : i32
    %c0_i32_0 = arith.constant 0 : i32
    %c0_i32_1 = arith.constant 0 : i32
    %c0_i32_2 = arith.constant 0 : i32
    return %c0_i32, %c0_i32_0, %c0_i32_1 : i32, i32, i32
  }
  func.func @transform_7(%arg0: i32) -> (i32, i32, i32) {
    %c0_i32 = arith.constant 0 : i32
    %c0_i32_0 = arith.constant 0 : i32
    %c0_i32_1 = arith.constant 0 : i32
    %c0_i32_2 = arith.constant 0 : i32
    return %c0_i32, %c0_i32_0, %c0_i32_1 : i32, i32, i32
  }
  func.func @transform_8(%arg0: i32) -> (i32, i32, i32) {
    %c0_i32 = arith.constant 0 : i32
    %c0_i32_0 = arith.constant 0 : i32
    %c0_i32_1 = arith.constant 0 : i32
    %c0_i32_2 = arith.constant 0 : i32
    return %c0_i32, %c0_i32_0, %c0_i32_1 : i32, i32, i32
  }
  func.func @transform_9(%arg0: i32) -> (i32, i32) {
    %c0_i32 = arith.constant 0 : i32
    %c0_i32_0 = arith.constant 0 : i32
    %c0_i32_1 = arith.constant 0 : i32
    return %c0_i32, %c0_i32_0 : i32, i32
  }
  func.func @transform_10(%arg0: i32) -> (i32, i32) {
    %c0_i32 = arith.constant 0 : i32
    %c0_i32_0 = arith.constant 0 : i32
    %c0_i32_1 = arith.constant 0 : i32
    return %c0_i32, %c0_i32_0 : i32, i32
  }
  func.func @transform_11(%arg0: i32) -> (i32, i32) {
    %c0_i32 = arith.constant 0 : i32
    %c0_i32_0 = arith.constant 0 : i32
    %c0_i32_1 = arith.constant 0 : i32
    return %c0_i32, %c0_i32_0 : i32, i32
  }
  func.func @transform_12(%arg0: i32) -> (i32, i32) {
    %c0_i32 = arith.constant 0 : i32
    %c0_i32_0 = arith.constant 0 : i32
    %c0_i32_1 = arith.constant 0 : i32
    return %c0_i32, %c0_i32_0 : i32, i32
  }
  func.func @transform_13(%arg0: i32) -> (i32, i32) {
    %c0_i32 = arith.constant 0 : i32
    %c0_i32_0 = arith.constant 0 : i32
    %c0_i32_1 = arith.constant 0 : i32
    return %c0_i32, %c0_i32_0 : i32, i32
  }
  func.func @transform_14(%arg0: i32) -> (i32, i32) {
    %c0_i32 = arith.constant 0 : i32
    %c0_i32_0 = arith.constant 0 : i32
    %c0_i32_1 = arith.constant 0 : i32
    return %c0_i32, %c0_i32_0 : i32, i32
  }
  func.func @transform_15(%arg0: i32) -> (i32, i32) {
    %c0_i32 = arith.constant 0 : i32
    %c0_i32_0 = arith.constant 0 : i32
    %c0_i32_1 = arith.constant 0 : i32
    return %c0_i32, %c0_i32_0 : i32, i32
  }
  func.func @transform_16(%arg0: i32) -> (i32, i32) {
    %c0_i32 = arith.constant 0 : i32
    %c0_i32_0 = arith.constant 0 : i32
    %c0_i32_1 = arith.constant 0 : i32
    return %c0_i32, %c0_i32_0 : i32, i32
  }
  func.func @transform_17(%arg0: i32) -> (i32, i32) {
    %c0_i32 = arith.constant 0 : i32
    %c0_i32_0 = arith.constant 0 : i32
    %c0_i32_1 = arith.constant 0 : i32
    return %c0_i32, %c0_i32_0 : i32, i32
  }
  func.func @transform_18(%arg0: i32) -> (i32, i32) {
    %c0_i32 = arith.constant 0 : i32
    %c0_i32_0 = arith.constant 0 : i32
    %c0_i32_1 = arith.constant 0 : i32
    return %c0_i32, %c0_i32_0 : i32, i32
  }
  func.func @transform_19(%arg0: i32) -> (i32, i32) {
    %c0_i32 = arith.constant 0 : i32
    %c0_i32_0 = arith.constant 0 : i32
    %c0_i32_1 = arith.constant 0 : i32
    return %c0_i32, %c0_i32_0 : i32, i32
  }
  func.func @transform_20(%arg0: i32) -> (i32, i32) {
    %c0_i32 = arith.constant 0 : i32
    %c0_i32_0 = arith.constant 0 : i32
    %c0_i32_1 = arith.constant 0 : i32
    return %c0_i32, %c0_i32_0 : i32, i32
  }
  func.func @transform_21(%arg0: i32) -> (i32, i32) {
    %c0_i32 = arith.constant 0 : i32
    %c0_i32_0 = arith.constant 0 : i32
    %c0_i32_1 = arith.constant 0 : i32
    return %c0_i32, %c0_i32_0 : i32, i32
  }
  func.func @transform_22(%arg0: i32) -> (i32, i32) {
    %c0_i32 = arith.constant 0 : i32
    %c0_i32_0 = arith.constant 0 : i32
    %c0_i32_1 = arith.constant 0 : i32
    return %c0_i32, %c0_i32_0 : i32, i32
  }
  func.func @transform_23(%arg0: i32) -> (i32, i32) {
    %c0_i32 = arith.constant 0 : i32
    %c0_i32_0 = arith.constant 0 : i32
    %c0_i32_1 = arith.constant 0 : i32
    return %c0_i32, %c0_i32_0 : i32, i32
  }
  func.func @transform_24(%arg0: i32) -> (i32, i32, i32) {
    %c0_i32 = arith.constant 0 : i32
    %c0_i32_0 = arith.constant 0 : i32
    %c0_i32_1 = arith.constant 0 : i32
    return %arg0, %c0_i32, %c0_i32_0 : i32, i32, i32
  }
}

</mosaic_0001>

<llo_original>
// kernel: tpu_custom_call.1
$region0: #{tpu_custom_call.1}
  #allocation0 [shape = 'u32[]', space=smem, size = 0x4, offset = 0x4, fixed_abs, tag = 'smem constant byte address 0x4 - core index']
  #allocation1 [shape = 'u32[144,128]{1,0:T(1,128)}', space=vmem, size = 0x12000, scoped, tag = 'internal scratch']
  %s0 = inlined_call_operand.vmem [shape: f32[2,8,32], index: 0, kind: input, shape index: {}]
  %s1 = inlined_call_operand.vmem [shape: bf16[2,8,8], index: 1, kind: input, shape index: {}]
  %s2 = inlined_call_operand.vmem [shape: bf16[2,32,16], index: 2, kind: input, shape index: {}]
  %s3 = inlined_call_operand.vmem [shape: f32[2,1,16], index: 3, kind: input, shape index: {}]
  %s4 = inlined_call_operand.vmem [shape: bf16[2,32,16], index: 4, kind: input, shape index: {}]
  %s5 = inlined_call_operand.vmem [shape: f32[2,1,16], index: 5, kind: input, shape index: {}]
  %s6 = inlined_call_operand.vmem [shape: bf16[2,32,16], index: 6, kind: input, shape index: {}]
  %s7 = inlined_call_operand.vmem [shape: f32[2,1,16], index: 7, kind: input, shape index: {}]
  %s8 = inlined_call_operand.vmem [shape: bf16[2,16,32], index: 8, kind: input, shape index: {}]
  %s9 = inlined_call_operand.vmem [shape: f32[1,32], index: 9, kind: input, shape index: {}]
  %s10 = inlined_call_operand.vmem [shape: f32[1,32], index: 10, kind: input, shape index: {}]
  %s11 = inlined_call_operand.vmem [shape: f32[1,32], index: 11, kind: input, shape index: {}]
  %s12 = inlined_call_operand.vmem [shape: bf16[32,64], index: 12, kind: input, shape index: {}]
  %s13 = inlined_call_operand.vmem [shape: f32[1,64], index: 13, kind: input, shape index: {}]
  %s14 = inlined_call_operand.vmem [shape: bf16[64,32], index: 14, kind: input, shape index: {}]
  %s15 = inlined_call_operand.vmem [shape: f32[1,32], index: 15, kind: input, shape index: {}]
  %s16 = inlined_call_operand.vmem [shape: f32[1,32], index: 16, kind: input, shape index: {}]
  %s17 = inlined_call_operand.vmem [shape: f32[1,32], index: 17, kind: input, shape index: {}]
  %s18 = inlined_call_operand.vmem [shape: bf16[32,8], index: 18, kind: input, shape index: {}]
  %s19 = inlined_call_operand.vmem [shape: f32[1,8], index: 19, kind: input, shape index: {}]
  %s20 = inlined_call_operand.vmem [shape: bf16[8,32], index: 20, kind: input, shape index: {}]
  %s21 = inlined_call_operand.vmem [shape: f32[1,32], index: 21, kind: input, shape index: {}]
  %s22 = inlined_call_operand.vmem [shape: f32[1,32], index: 22, kind: input, shape index: {}]
  %s23 = inlined_call_operand.vmem [shape: f32[1,32], index: 23, kind: input, shape index: {}]
  %s24 = inlined_call_operand.hbm [shape: f32[2,8,32], index: 24, kind: output, shape index: {}]
  %s25 = sld [smem:[#allocation0]]
  $region129: #{tpu_custom_call.1} parent=0
    _
  %s27 = ssub.s32 1, %s25
  %s28 = scalar_select 0, %s27, %s25
  $region1: #{tpu_custom_call.1} parent=0
    #allocation2 [shape = 'u8[8192]{0}', space=vmem, size = 0x2000, scoped, tag = 'output window, operand 0']
    #allocation3 [shape = 's32[2]{0}', space=sflag, size = 0x8, scoped, tag = 'scoped memory for tpu_custom_call.1']
    %29 = vsyncpa [#allocation3], 0
    %s30 = scalar_lea.sflag [#allocation3], 1
    %31 = vsyncpa %s30, 0
    loop: start=0, step=1, limit=4
    $region2: #{tpu_custom_call.1} parent=1 // loop_pre_header
      _
    $region3: #{tpu_custom_call.1} parent=1 // loop_header
      %s33 = sphi 0, %s37
      %p34 = scmp.ge.s32.totalorder %s33, 4
      %s43 = sphi 0, %s45
      %s46 = sphi 0, %s43
      %s47 = sphi 0, %s46
      %s63 = sphi 0, %s47
      %s69 = sphi 0, %s71
      %s72 = sphi 0, %s69
      %s73 = sphi 0, %s72
      %s89 = sphi 0, %s73
      %s93 = sphi 0, %s93
      %s95 = sphi 0, %s93
      %s96 = sphi 0, %s95
      %s110 = sphi 0, %s96
      %s114 = sphi 0, %s114
      %s116 = sphi 0, %s114
      %s117 = sphi 0, %s116
      %s131 = sphi 0, %s117
      %s135 = sphi 0, %s135
      %s137 = sphi 0, %s135
      %s138 = sphi 0, %s137
      %s152 = sphi 0, %s138
      %s156 = sphi 0, %s156
      %s158 = sphi 0, %s156
      %s159 = sphi 0, %s158
      %s173 = sphi 0, %s159
      %s177 = sphi 0, %s177
      %s179 = sphi 0, %s177
      %s180 = sphi 0, %s179
      %s194 = sphi 0, %s180
      %s198 = sphi 0, %s198
      %s200 = sphi 0, %s198
      %s201 = sphi 0, %s200
      %s215 = sphi 0, %s201
      %s219 = sphi 0, %s219
      %s221 = sphi 0, %s219
      %s222 = sphi 0, %s221
      %s236 = sphi 0, %s222
      %s240 = sphi 0, %s240
      %s242 = sphi 0, %s240
      %s243 = sphi 0, %s242
      %s257 = sphi 0, %s243
      %s261 = sphi 0, %s261
      %s263 = sphi 0, %s261
      %s264 = sphi 0, %s263
      %s278 = sphi 0, %s264
      %s282 = sphi 0, %s282
      %s284 = sphi 0, %s282
      %s285 = sphi 0, %s284
      %s299 = sphi 0, %s285
      %s303 = sphi 0, %s303
      %s305 = sphi 0, %s303
      %s306 = sphi 0, %s305
      %s320 = sphi 0, %s306
      %s324 = sphi 0, %s324
      %s326 = sphi 0, %s324
      %s327 = sphi 0, %s326
      %s341 = sphi 0, %s327
      %s345 = sphi 0, %s345
      %s347 = sphi 0, %s345
      %s348 = sphi 0, %s347
      %s362 = sphi 0, %s348
      %s366 = sphi 0, %s366
      %s368 = sphi 0, %s366
      %s369 = sphi 0, %s368
      %s383 = sphi 0, %s369
      %s387 = sphi 0, %s387
      %s389 = sphi 0, %s387
      %s390 = sphi 0, %s389
      %s404 = sphi 0, %s390
      %s408 = sphi 0, %s408
      %s410 = sphi 0, %s408
      %s411 = sphi 0, %s410
      %s425 = sphi 0, %s411
      %s429 = sphi 0, %s429
      %s431 = sphi 0, %s429
      %s432 = sphi 0, %s431
      %s446 = sphi 0, %s432
      %s450 = sphi 0, %s450
      %s452 = sphi 0, %s450
      %s453 = sphi 0, %s452
      %s467 = sphi 0, %s453
      %s471 = sphi 0, %s471
      %s473 = sphi 0, %s471
      %s474 = sphi 0, %s473
      %s488 = sphi 0, %s474
      %s492 = sphi 0, %s492
      %s494 = sphi 0, %s492
      %s495 = sphi 0, %s494
      %s509 = sphi 0, %s495
      %s513 = sphi 0, %s513
      %s515 = sphi 0, %s513
      %s516 = sphi 0, %s515
      %s530 = sphi 0, %s516
      %s534 = sphi 0, %s534
      %s536 = sphi 0, %s534
      %s537 = sphi 0, %s536
      %s551 = sphi 0, %s537
      %s557 = sphi 0, %s559
      %s560 = sphi 0, %s557
      %s561 = sphi 0, %s560
      %s577 = sphi 0, %s561
    $region4: #{tpu_custom_call.1} parent=1 // loop_header_branch
      %36 = sbr.rel (%p34) target = $region8
    $region5: #{tpu_custom_call.1} parent=1 // loop_body
      %s38 = ssub.s32 %s33, 1
      %s39 = ssub.s32 %s33, 2
      %s40 = sadd.s32 %s33, 1
      %s41 = ssub.s32 %s33, %s40
      %p42 = scmp.eq.s32.totalorder %s41, 0
      %s44 = sadd.s32 %s43, 1
      %s45 = scalar_select %p42, %s43, %s44
      %p48 = pneg %p42
      %p49 = scmp.eq.s32.totalorder %s33, 1
      %p50 = por %p48, %p49
      %p51 = scmp.ne.s32.totalorder %s43, %s46
      %p52 = scmp.eq.s32.totalorder %s33, 0
      %p53 = por %p51, %p52
      %p54 = scmp.ne.s32.totalorder %s43, %s46
      %p55 = scmp.eq.s32.totalorder %s38, 1
      %p56 = por %p54, %p55
      %p57 = scmp.ne.s32.totalorder %s46, %s47
      %p58 = scmp.eq.s32.totalorder %s38, 0
      %p59 = por %p57, %p58
      %p60 = scmp.ne.s32.totalorder %s46, %s47
      %p61 = scmp.eq.s32.totalorder %s39, 1
      %p62 = por %p60, %p61
      %p64 = scmp.ne.s32.totalorder %s47, %s63
      %p65 = scmp.eq.s32.totalorder %s39, 0
      %p66 = por %p64, %p65
      %s67 = ssub.s32 %s33, %s40
      %p68 = scmp.eq.s32.totalorder %s67, 0
      %s70 = sadd.s32 %s69, 1
      %s71 = scalar_select %p68, %s69, %s70
      %p74 = pneg %p68
      %p75 = scmp.eq.s32.totalorder %s33, 1
      %p76 = por %p74, %p75
      %p77 = scmp.ne.s32.totalorder %s69, %s72
      %p78 = scmp.eq.s32.totalorder %s33, 0
      %p79 = por %p77, %p78
      %p80 = scmp.ne.s32.totalorder %s69, %s72
      %p81 = scmp.eq.s32.totalorder %s38, 1
      %p82 = por %p80, %p81
      %p83 = scmp.ne.s32.totalorder %s72, %s73
      %p84 = scmp.eq.s32.totalorder %s38, 0
      %p85 = por %p83, %p84
      %p86 = scmp.ne.s32.totalorder %s72, %s73
      %p87 = scmp.eq.s32.totalorder %s39, 1
      %p88 = por %p86, %p87
      %p90 = scmp.ne.s32.totalorder %s73, %s89
      %p91 = scmp.eq.s32.totalorder %s39, 0
      %p92 = por %p90, %p91
      %s94 = sadd.s32 %s93, 1
      %p97 = scmp.eq.s32.totalorder %s33, 1
      %p98 = scmp.ne.s32.totalorder %s93, %s95
      %p99 = scmp.eq.s32.totalorder %s33, 0
      %p100 = por %p98, %p99
      %p101 = scmp.ne.s32.totalorder %s93, %s95
      %p102 = scmp.eq.s32.totalorder %s38, 1
      %p103 = por %p101, %p102
      %p104 = scmp.ne.s32.totalorder %s95, %s96
      %p105 = scmp.eq.s32.totalorder %s38, 0
      %p106 = por %p104, %p105
      %p107 = scmp.ne.s32.totalorder %s95, %s96
      %p108 = scmp.eq.s32.totalorder %s39, 1
      %p109 = por %p107, %p108
      %p111 = scmp.ne.s32.totalorder %s96, %s110
      %p112 = scmp.eq.s32.totalorder %s39, 0
      %p113 = por %p111, %p112
      %s115 = sadd.s32 %s114, 1
      %p118 = scmp.eq.s32.totalorder %s33, 1
      %p119 = scmp.ne.s32.totalorder %s114, %s116
      %p120 = scmp.eq.s32.totalorder %s33, 0
      %p121 = por %p119, %p120
      %p122 = scmp.ne.s32.totalorder %s114, %s116
      %p123 = scmp.eq.s32.totalorder %s38, 1
      %p124 = por %p122, %p123
      %p125 = scmp.ne.s32.totalorder %s116, %s117
      %p126 = scmp.eq.s32.totalorder %s38, 0
      %p127 = por %p125, %p126
      %p128 = scmp.ne.s32.totalorder %s116, %s117
      %p129 = scmp.eq.s32.totalorder %s39, 1
      %p130 = por %p128, %p129
      %p132 = scmp.ne.s32.totalorder %s117, %s131
      %p133 = scmp.eq.s32.totalorder %s39, 0
      %p134 = por %p132, %p133
      %s136 = sadd.s32 %s135, 1
      %p139 = scmp.eq.s32.totalorder %s33, 1
      %p140 = scmp.ne.s32.totalorder %s135, %s137
      %p141 = scmp.eq.s32.totalorder %s33, 0
      %p142 = por %p140, %p141
      %p143 = scmp.ne.s32.totalorder %s135, %s137
      %p144 = scmp.eq.s32.totalorder %s38, 1
      %p145 = por %p143, %p144
      %p146 = scmp.ne.s32.totalorder %s137, %s138
      %p147 = scmp.eq.s32.totalorder %s38, 0
      %p148 = por %p146, %p147
      %p149 = scmp.ne.s32.totalorder %s137, %s138
      %p150 = scmp.eq.s32.totalorder %s39, 1
      %p151 = por %p149, %p150
      %p153 = scmp.ne.s32.totalorder %s138, %s152
      %p154 = scmp.eq.s32.totalorder %s39, 0
      %p155 = por %p153, %p154
      %s157 = sadd.s32 %s156, 1
      %p160 = scmp.eq.s32.totalorder %s33, 1
      %p161 = scmp.ne.s32.totalorder %s156, %s158
      %p162 = scmp.eq.s32.totalorder %s33, 0
      %p163 = por %p161, %p162
      %p164 = scmp.ne.s32.totalorder %s156, %s158
      %p165 = scmp.eq.s32.totalorder %s38, 1
      %p166 = por %p164, %p165
      %p167 = scmp.ne.s32.totalorder %s158, %s159
      %p168 = scmp.eq.s32.totalorder %s38, 0
      %p169 = por %p167, %p168
      %p170 = scmp.ne.s32.totalorder %s158, %s159
      %p171 = scmp.eq.s32.totalorder %s39, 1
      %p172 = por %p170, %p171
      %p174 = scmp.ne.s32.totalorder %s159, %s173
      %p175 = scmp.eq.s32.totalorder %s39, 0
      %p176 = por %p174, %p175
      %s178 = sadd.s32 %s177, 1
      %p181 = scmp.eq.s32.totalorder %s33, 1
      %p182 = scmp.ne.s32.totalorder %s177, %s179
      %p183 = scmp.eq.s32.totalorder %s33, 0
      %p184 = por %p182, %p183
      %p185 = scmp.ne.s32.totalorder %s177, %s179
      %p186 = scmp.eq.s32.totalorder %s38, 1
      %p187 = por %p185, %p186
      %p188 = scmp.ne.s32.totalorder %s179, %s180
      %p189 = scmp.eq.s32.totalorder %s38, 0
      %p190 = por %p188, %p189
      %p191 = scmp.ne.s32.totalorder %s179, %s180
      %p192 = scmp.eq.s32.totalorder %s39, 1
      %p193 = por %p191, %p192
      %p195 = scmp.ne.s32.totalorder %s180, %s194
      %p196 = scmp.eq.s32.totalorder %s39, 0
      %p197 = por %p195, %p196
      %s199 = sadd.s32 %s198, 1
      %p202 = scmp.eq.s32.totalorder %s33, 1
      %p203 = scmp.ne.s32.totalorder %s198, %s200
      %p204 = scmp.eq.s32.totalorder %s33, 0
      %p205 = por %p203, %p204
      %p206 = scmp.ne.s32.totalorder %s198, %s200
      %p207 = scmp.eq.s32.totalorder %s38, 1
      %p208 = por %p206, %p207
      %p209 = scmp.ne.s32.totalorder %s200, %s201
      %p210 = scmp.eq.s32.totalorder %s38, 0
      %p211 = por %p209, %p210
      %p212 = scmp.ne.s32.totalorder %s200, %s201
      %p213 = scmp.eq.s32.totalorder %s39, 1
      %p214 = por %p212, %p213
      %p216 = scmp.ne.s32.totalorder %s201, %s215
      %p217 = scmp.eq.s32.totalorder %s39, 0
      %p218 = por %p216, %p217
      %s220 = sadd.s32 %s219, 1
      %p223 = scmp.eq.s32.totalorder %s33, 1
      %p224 = scmp.ne.s32.totalorder %s219, %s221
      %p225 = scmp.eq.s32.totalorder %s33, 0
      %p226 = por %p224, %p225
      %p227 = scmp.ne.s32.totalorder %s219, %s221
      %p228 = scmp.eq.s32.totalorder %s38, 1
      %p229 = por %p227, %p228
      %p230 = scmp.ne.s32.totalorder %s221, %s222
      %p231 = scmp.eq.s32.totalorder %s38, 0
      %p232 = por %p230, %p231
      %p233 = scmp.ne.s32.totalorder %s221, %s222
      %p234 = scmp.eq.s32.totalorder %s39, 1
      %p235 = por %p233, %p234
      %p237 = scmp.ne.s32.totalorder %s222, %s236
      %p238 = scmp.eq.s32.totalorder %s39, 0
      %p239 = por %p237, %p238
      %s241 = sadd.s32 %s240, 1
      %p244 = scmp.eq.s32.totalorder %s33, 1
      %p245 = scmp.ne.s32.totalorder %s240, %s242
      %p246 = scmp.eq.s32.totalorder %s33, 0
      %p247 = por %p245, %p246
      %p248 = scmp.ne.s32.totalorder %s240, %s242
      %p249 = scmp.eq.s32.totalorder %s38, 1
      %p250 = por %p248, %p249
      %p251 = scmp.ne.s32.totalorder %s242, %s243
      %p252 = scmp.eq.s32.totalorder %s38, 0
      %p253 = por %p251, %p252
      %p254 = scmp.ne.s32.totalorder %s242, %s243
      %p255 = scmp.eq.s32.totalorder %s39, 1
      %p256 = por %p254, %p255
      %p258 = scmp.ne.s32.totalorder %s243, %s257
      %p259 = scmp.eq.s32.totalorder %s39, 0
      %p260 = por %p258, %p259
      %s262 = sadd.s32 %s261, 1
      %p265 = scmp.eq.s32.totalorder %s33, 1
      %p266 = scmp.ne.s32.totalorder %s261, %s263
      %p267 = scmp.eq.s32.totalorder %s33, 0
      %p268 = por %p266, %p267
      %p269 = scmp.ne.s32.totalorder %s261, %s263
      %p270 = scmp.eq.s32.totalorder %s38, 1
      %p271 = por %p269, %p270
      %p272 = scmp.ne.s32.totalorder %s263, %s264
      %p273 = scmp.eq.s32.totalorder %s38, 0
      %p274 = por %p272, %p273
      %p275 = scmp.ne.s32.totalorder %s263, %s264
      %p276 = scmp.eq.s32.totalorder %s39, 1
      %p277 = por %p275, %p276
      %p279 = scmp.ne.s32.totalorder %s264, %s278
      %p280 = scmp.eq.s32.totalorder %s39, 0
      %p281 = por %p279, %p280
      %s283 = sadd.s32 %s282, 1
      %p286 = scmp.eq.s32.totalorder %s33, 1
      %p287 = scmp.ne.s32.totalorder %s282, %s284
      %p288 = scmp.eq.s32.totalorder %s33, 0
      %p289 = por %p287, %p288
      %p290 = scmp.ne.s32.totalorder %s282, %s284
      %p291 = scmp.eq.s32.totalorder %s38, 1
      %p292 = por %p290, %p291
      %p293 = scmp.ne.s32.totalorder %s284, %s285
      %p294 = scmp.eq.s32.totalorder %s38, 0
      %p295 = por %p293, %p294
      %p296 = scmp.ne.s32.totalorder %s284, %s285
      %p297 = scmp.eq.s32.totalorder %s39, 1
      %p298 = por %p296, %p297
      %p300 = scmp.ne.s32.totalorder %s285, %s299
      %p301 = scmp.eq.s32.totalorder %s39, 0
      %p302 = por %p300, %p301
      %s304 = sadd.s32 %s303, 1
      %p307 = scmp.eq.s32.totalorder %s33, 1
      %p308 = scmp.ne.s32.totalorder %s303, %s305
      %p309 = scmp.eq.s32.totalorder %s33, 0
      %p310 = por %p308, %p309
      %p311 = scmp.ne.s32.totalorder %s303, %s305
      %p312 = scmp.eq.s32.totalorder %s38, 1
      %p313 = por %p311, %p312
      %p314 = scmp.ne.s32.totalorder %s305, %s306
      %p315 = scmp.eq.s32.totalorder %s38, 0
      %p316 = por %p314, %p315
      %p317 = scmp.ne.s32.totalorder %s305, %s306
      %p318 = scmp.eq.s32.totalorder %s39, 1
      %p319 = por %p317, %p318
      %p321 = scmp.ne.s32.totalorder %s306, %s320
      %p322 = scmp.eq.s32.totalorder %s39, 0
      %p323 = por %p321, %p322
      %s325 = sadd.s32 %s324, 1
      %p328 = scmp.eq.s32.totalorder %s33, 1
      %p329 = scmp.ne.s32.totalorder %s324, %s326
      %p330 = scmp.eq.s32.totalorder %s33, 0
      %p331 = por %p329, %p330
      %p332 = scmp.ne.s32.totalorder %s324, %s326
      %p333 = scmp.eq.s32.totalorder %s38, 1
      %p334 = por %p332, %p333
      %p335 = scmp.ne.s32.totalorder %s326, %s327
      %p336 = scmp.eq.s32.totalorder %s38, 0
      %p337 = por %p335, %p336
      %p338 = scmp.ne.s32.totalorder %s326, %s327
      %p339 = scmp.eq.s32.totalorder %s39, 1
      %p340 = por %p338, %p339
      %p342 = scmp.ne.s32.totalorder %s327, %s341
      %p343 = scmp.eq.s32.totalorder %s39, 0
      %p344 = por %p342, %p343
      %s346 = sadd.s32 %s345, 1
      %p349 = scmp.eq.s32.totalorder %s33, 1
      %p350 = scmp.ne.s32.totalorder %s345, %s347
      %p351 = scmp.eq.s32.totalorder %s33, 0
      %p352 = por %p350, %p351
      %p353 = scmp.ne.s32.totalorder %s345, %s347
      %p354 = scmp.eq.s32.totalorder %s38, 1
      %p355 = por %p353, %p354
      %p356 = scmp.ne.s32.totalorder %s347, %s348
      %p357 = scmp.eq.s32.totalorder %s38, 0
      %p358 = por %p356, %p357
      %p359 = scmp.ne.s32.totalorder %s347, %s348
      %p360 = scmp.eq.s32.totalorder %s39, 1
      %p361 = por %p359, %p360
      %p363 = scmp.ne.s32.totalorder %s348, %s362
      %p364 = scmp.eq.s32.totalorder %s39, 0
      %p365 = por %p363, %p364
      %s367 = sadd.s32 %s366, 1
      %p370 = scmp.eq.s32.totalorder %s33, 1
      %p371 = scmp.ne.s32.totalorder %s366, %s368
      %p372 = scmp.eq.s32.totalorder %s33, 0
      %p373 = por %p371, %p372
      %p374 = scmp.ne.s32.totalorder %s366, %s368
      %p375 = scmp.eq.s32.totalorder %s38, 1
      %p376 = por %p374, %p375
      %p377 = scmp.ne.s32.totalorder %s368, %s369
      %p378 = scmp.eq.s32.totalorder %s38, 0
      %p379 = por %p377, %p378
      %p380 = scmp.ne.s32.totalorder %s368, %s369
      %p381 = scmp.eq.s32.totalorder %s39, 1
      %p382 = por %p380, %p381
      %p384 = scmp.ne.s32.totalorder %s369, %s383
      %p385 = scmp.eq.s32.totalorder %s39, 0
      %p386 = por %p384, %p385
      %s388 = sadd.s32 %s387, 1
      %p391 = scmp.eq.s32.totalorder %s33, 1
      %p392 = scmp.ne.s32.totalorder %s387, %s389
      %p393 = scmp.eq.s32.totalorder %s33, 0
      %p394 = por %p392, %p393
      %p395 = scmp.ne.s32.totalorder %s387, %s389
      %p396 = scmp.eq.s32.totalorder %s38, 1
      %p397 = por %p395, %p396
      %p398 = scmp.ne.s32.totalorder %s389, %s390
      %p399 = scmp.eq.s32.totalorder %s38, 0
      %p400 = por %p398, %p399
      %p401 = scmp.ne.s32.totalorder %s389, %s390
      %p402 = scmp.eq.s32.totalorder %s39, 1
      %p403 = por %p401, %p402
      %p405 = scmp.ne.s32.totalorder %s390, %s404
      %p406 = scmp.eq.s32.totalorder %s39, 0
      %p407 = por %p405, %p406
      %s409 = sadd.s32 %s408, 1
      %p412 = scmp.eq.s32.totalorder %s33, 1
      %p413 = scmp.ne.s32.totalorder %s408, %s410
      %p414 = scmp.eq.s32.totalorder %s33, 0
      %p415 = por %p413, %p414
      %p416 = scmp.ne.s32.totalorder %s408, %s410
      %p417 = scmp.eq.s32.totalorder %s38, 1
      %p418 = por %p416, %p417
      %p419 = scmp.ne.s32.totalorder %s410, %s411
      %p420 = scmp.eq.s32.totalorder %s38, 0
      %p421 = por %p419, %p420
      %p422 = scmp.ne.s32.totalorder %s410, %s411
      %p423 = scmp.eq.s32.totalorder %s39, 1
      %p424 = por %p422, %p423
      %p426 = scmp.ne.s32.totalorder %s411, %s425
      %p427 = scmp.eq.s32.totalorder %s39, 0
      %p428 = por %p426, %p427
      %s430 = sadd.s32 %s429, 1
      %p433 = scmp.eq.s32.totalorder %s33, 1
      %p434 = scmp.ne.s32.totalorder %s429, %s431
      %p435 = scmp.eq.s32.totalorder %s33, 0
      %p436 = por %p434, %p435
      %p437 = scmp.ne.s32.totalorder %s429, %s431
      %p438 = scmp.eq.s32.totalorder %s38, 1
      %p439 = por %p437, %p438
      %p440 = scmp.ne.s32.totalorder %s431, %s432
      %p441 = scmp.eq.s32.totalorder %s38, 0
      %p442 = por %p440, %p441
      %p443 = scmp.ne.s32.totalorder %s431, %s432
      %p444 = scmp.eq.s32.totalorder %s39, 1
      %p445 = por %p443, %p444
      %p447 = scmp.ne.s32.totalorder %s432, %s446
      %p448 = scmp.eq.s32.totalorder %s39, 0
      %p449 = por %p447, %p448
      %s451 = sadd.s32 %s450, 1
      %p454 = scmp.eq.s32.totalorder %s33, 1
      %p455 = scmp.ne.s32.totalorder %s450, %s452
      %p456 = scmp.eq.s32.totalorder %s33, 0
      %p457 = por %p455, %p456
      %p458 = scmp.ne.s32.totalorder %s450, %s452
      %p459 = scmp.eq.s32.totalorder %s38, 1
      %p460 = por %p458, %p459
      %p461 = scmp.ne.s32.totalorder %s452, %s453
      %p462 = scmp.eq.s32.totalorder %s38, 0
      %p463 = por %p461, %p462
      %p464 = scmp.ne.s32.totalorder %s452, %s453
      %p465 = scmp.eq.s32.totalorder %s39, 1
      %p466 = por %p464, %p465
      %p468 = scmp.ne.s32.totalorder %s453, %s467
      %p469 = scmp.eq.s32.totalorder %s39, 0
      %p470 = por %p468, %p469
      %s472 = sadd.s32 %s471, 1
      %p475 = scmp.eq.s32.totalorder %s33, 1
      %p476 = scmp.ne.s32.totalorder %s471, %s473
      %p477 = scmp.eq.s32.totalorder %s33, 0
      %p478 = por %p476, %p477
      %p479 = scmp.ne.s32.totalorder %s471, %s473
      %p480 = scmp.eq.s32.totalorder %s38, 1
      %p481 = por %p479, %p480
      %p482 = scmp.ne.s32.totalorder %s473, %s474
      %p483 = scmp.eq.s32.totalorder %s38, 0
      %p484 = por %p482, %p483
      %p485 = scmp.ne.s32.totalorder %s473, %s474
      %p486 = scmp.eq.s32.totalorder %s39, 1
      %p487 = por %p485, %p486
      %p489 = scmp.ne.s32.totalorder %s474, %s488
      %p490 = scmp.eq.s32.totalorder %s39, 0
      %p491 = por %p489, %p490
      %s493 = sadd.s32 %s492, 1
      %p496 = scmp.eq.s32.totalorder %s33, 1
      %p497 = scmp.ne.s32.totalorder %s492, %s494
      %p498 = scmp.eq.s32.totalorder %s33, 0
      %p499 = por %p497, %p498
      %p500 = scmp.ne.s32.totalorder %s492, %s494
      %p501 = scmp.eq.s32.totalorder %s38, 1
      %p502 = por %p500, %p501
      %p503 = scmp.ne.s32.totalorder %s494, %s495
      %p504 = scmp.eq.s32.totalorder %s38, 0
      %p505 = por %p503, %p504
      %p506 = scmp.ne.s32.totalorder %s494, %s495
      %p507 = scmp.eq.s32.totalorder %s39, 1
      %p508 = por %p506, %p507
      %p510 = scmp.ne.s32.totalorder %s495, %s509
      %p511 = scmp.eq.s32.totalorder %s39, 0
      %p512 = por %p510, %p511
      %s514 = sadd.s32 %s513, 1
      %p517 = scmp.eq.s32.totalorder %s33, 1
      %p518 = scmp.ne.s32.totalorder %s513, %s515
      %p519 = scmp.eq.s32.totalorder %s33, 0
      %p520 = por %p518, %p519
      %p521 = scmp.ne.s32.totalorder %s513, %s515
      %p522 = scmp.eq.s32.totalorder %s38, 1
      %p523 = por %p521, %p522
      %p524 = scmp.ne.s32.totalorder %s515, %s516
      %p525 = scmp.eq.s32.totalorder %s38, 0
      %p526 = por %p524, %p525
      %p527 = scmp.ne.s32.totalorder %s515, %s516
      %p528 = scmp.eq.s32.totalorder %s39, 1
      %p529 = por %p527, %p528
      %p531 = scmp.ne.s32.totalorder %s516, %s530
      %p532 = scmp.eq.s32.totalorder %s39, 0
      %p533 = por %p531, %p532
      %s535 = sadd.s32 %s534, 1
      %p538 = scmp.eq.s32.totalorder %s33, 1
      %p539 = scmp.ne.s32.totalorder %s534, %s536
      %p540 = scmp.eq.s32.totalorder %s33, 0
      %p541 = por %p539, %p540
      %p542 = scmp.ne.s32.totalorder %s534, %s536
      %p543 = scmp.eq.s32.totalorder %s38, 1
      %p544 = por %p542, %p543
      %p545 = scmp.ne.s32.totalorder %s536, %s537
      %p546 = scmp.eq.s32.totalorder %s38, 0
      %p547 = por %p545, %p546
      %p548 = scmp.ne.s32.totalorder %s536, %s537
      %p549 = scmp.eq.s32.totalorder %s39, 1
      %p550 = por %p548, %p549
      %p552 = scmp.ne.s32.totalorder %s537, %s551
      %p553 = scmp.eq.s32.totalorder %s39, 0
      %p554 = por %p552, %p553
      %s555 = ssub.s32 %s33, %s40
      %p556 = scmp.eq.s32.totalorder %s555, 0
      %s558 = sadd.s32 %s557, 1
      %s559 = scalar_select %p556, %s557, %s558
      %p562 = pneg %p556
      %p563 = scmp.eq.s32.totalorder %s33, 1
      %p564 = por %p562, %p563
      %p565 = scmp.ne.s32.totalorder %s557, %s560
      %p566 = scmp.eq.s32.totalorder %s33, 0
      %p567 = por %p565, %p566
      %p568 = scmp.ne.s32.totalorder %s557, %s560
      %p569 = scmp.eq.s32.totalorder %s38, 1
      %p570 = por %p568, %p569
      %p571 = scmp.ne.s32.totalorder %s560, %s561
      %p572 = scmp.eq.s32.totalorder %s38, 0
      %p573 = por %p571, %p572
      %p574 = scmp.ne.s32.totalorder %s560, %s561
      %p575 = scmp.eq.s32.totalorder %s39, 1
      %p576 = por %p574, %p575
      %p578 = scmp.ne.s32.totalorder %s561, %s577
      %p579 = scmp.eq.s32.totalorder %s39, 0
      %p580 = por %p578, %p579
      %p581 = scmp.le.s32.totalorder 1, %s33
      %p582 = scmp.lt.s32.totalorder %s33, 3
      %p583 = pnand %p581, %p582
      %p584 = pneg %p583
      // Predicated region
      $region9: #{tpu_custom_call.1} parent=5 // pred_check
        _
      $region10: #{tpu_custom_call.1} parent=5 // pred_check_branch
        %586 = sbr.rel (%p583) target = $region12
      $region11: #{tpu_custom_call.1} parent=5 // pred_region
        %s587 = ssub.s32 %s33, 1
        // Predicated region
        $region13: #{tpu_custom_call.1} parent=11 // pred_check
          %p588 = pneg %p106
        $region14: #{tpu_custom_call.1} parent=11 // pred_check_branch
          %590 = sbr.rel (%p588) target = $region16
        $region15: #{tpu_custom_call.1} parent=11 // pred_region
          _
        $region16: #{tpu_custom_call.1} parent=11 // pred_fallthru
          _
        // Predicated region
        $region17: #{tpu_custom_call.1} parent=11 // pred_check
          %p591 = pneg %p127
        $region18: #{tpu_custom_call.1} parent=11 // pred_check_branch
          %593 = sbr.rel (%p591) target = $region20
        $region19: #{tpu_custom_call.1} parent=11 // pred_region
          _
        $region20: #{tpu_custom_call.1} parent=11 // pred_fallthru
          _
        // Predicated region
        $region21: #{tpu_custom_call.1} parent=11 // pred_check
          %p594 = pneg %p148
        $region22: #{tpu_custom_call.1} parent=11 // pred_check_branch
          %596 = sbr.rel (%p594) target = $region24
        $region23: #{tpu_custom_call.1} parent=11 // pred_region
          _
        $region24: #{tpu_custom_call.1} parent=11 // pred_fallthru
          _
        // Predicated region
        $region25: #{tpu_custom_call.1} parent=11 // pred_check
          %p597 = pneg %p169
        $region26: #{tpu_custom_call.1} parent=11 // pred_check_branch
          %599 = sbr.rel (%p597) target = $region28
        $region27: #{tpu_custom_call.1} parent=11 // pred_region
          _
        $region28: #{tpu_custom_call.1} parent=11 // pred_fallthru
          _
        // Predicated region
        $region29: #{tpu_custom_call.1} parent=11 // pred_check
          %p600 = pneg %p190
        $region30: #{tpu_custom_call.1} parent=11 // pred_check_branch
          %602 = sbr.rel (%p600) target = $region32
        $region31: #{tpu_custom_call.1} parent=11 // pred_region
          _
        $region32: #{tpu_custom_call.1} parent=11 // pred_fallthru
          _
        // Predicated region
        $region33: #{tpu_custom_call.1} parent=11 // pred_check
          %p603 = pneg %p211
        $region34: #{tpu_custom_call.1} parent=11 // pred_check_branch
          %605 = sbr.rel (%p603) target = $region36
        $region35: #{tpu_custom_call.1} parent=11 // pred_region
          _
        $region36: #{tpu_custom_call.1} parent=11 // pred_fallthru
          _
        // Predicated region
        $region37: #{tpu_custom_call.1} parent=11 // pred_check
          %p606 = pneg %p232
        $region38: #{tpu_custom_call.1} parent=11 // pred_check_branch
          %608 = sbr.rel (%p606) target = $region40
        $region39: #{tpu_custom_call.1} parent=11 // pred_region
          _
        $region40: #{tpu_custom_call.1} parent=11 // pred_fallthru
          _
        // Predicated region
        $region41: #{tpu_custom_call.1} parent=11 // pred_check
          %p609 = pneg %p253
        $region42: #{tpu_custom_call.1} parent=11 // pred_check_branch
          %611 = sbr.rel (%p609) target = $region44
        $region43: #{tpu_custom_call.1} parent=11 // pred_region
          _
        $region44: #{tpu_custom_call.1} parent=11 // pred_fallthru
          _
        // Predicated region
        $region45: #{tpu_custom_call.1} parent=11 // pred_check
          %p612 = pneg %p274
        $region46: #{tpu_custom_call.1} parent=11 // pred_check_branch
          %614 = sbr.rel (%p612) target = $region48
        $region47: #{tpu_custom_call.1} parent=11 // pred_region
          _
        $region48: #{tpu_custom_call.1} parent=11 // pred_fallthru
          _
        // Predicated region
        $region49: #{tpu_custom_call.1} parent=11 // pred_check
          %p615 = pneg %p295
        $region50: #{tpu_custom_call.1} parent=11 // pred_check_branch
          %617 = sbr.rel (%p615) target = $region52
        $region51: #{tpu_custom_call.1} parent=11 // pred_region
          _
        $region52: #{tpu_custom_call.1} parent=11 // pred_fallthru
          _
        // Predicated region
        $region53: #{tpu_custom_call.1} parent=11 // pred_check
          %p618 = pneg %p316
        $region54: #{tpu_custom_call.1} parent=11 // pred_check_branch
          %620 = sbr.rel (%p618) target = $region56
        $region55: #{tpu_custom_call.1} parent=11 // pred_region
          _
        $region56: #{tpu_custom_call.1} parent=11 // pred_fallthru
          _
        // Predicated region
        $region57: #{tpu_custom_call.1} parent=11 // pred_check
          %p621 = pneg %p337
        $region58: #{tpu_custom_call.1} parent=11 // pred_check_branch
          %623 = sbr.rel (%p621) target = $region60
        $region59: #{tpu_custom_call.1} parent=11 // pred_region
          _
        $region60: #{tpu_custom_call.1} parent=11 // pred_fallthru
          _
        // Predicated region
        $region61: #{tpu_custom_call.1} parent=11 // pred_check
          %p624 = pneg %p358
        $region62: #{tpu_custom_call.1} parent=11 // pred_check_branch
          %626 = sbr.rel (%p624) target = $region64
        $region63: #{tpu_custom_call.1} parent=11 // pred_region
          _
        $region64: #{tpu_custom_call.1} parent=11 // pred_fallthru
          _
        // Predicated region
        $region65: #{tpu_custom_call.1} parent=11 // pred_check
          %p627 = pneg %p379
        $region66: #{tpu_custom_call.1} parent=11 // pred_check_branch
          %629 = sbr.rel (%p627) target = $region68
        $region67: #{tpu_custom_call.1} parent=11 // pred_region
          _
        $region68: #{tpu_custom_call.1} parent=11 // pred_fallthru
          _
        // Predicated region
        $region69: #{tpu_custom_call.1} parent=11 // pred_check
          %p630 = pneg %p400
        $region70: #{tpu_custom_call.1} parent=11 // pred_check_branch
          %632 = sbr.rel (%p630) target = $region72
        $region71: #{tpu_custom_call.1} parent=11 // pred_region
          _
        $region72: #{tpu_custom_call.1} parent=11 // pred_fallthru
          _
        // Predicated region
        $region73: #{tpu_custom_call.1} parent=11 // pred_check
          %p633 = pneg %p421
        $region74: #{tpu_custom_call.1} parent=11 // pred_check_branch
          %635 = sbr.rel (%p633) target = $region76
        $region75: #{tpu_custom_call.1} parent=11 // pred_region
          _
        $region76: #{tpu_custom_call.1} parent=11 // pred_fallthru
          _
        // Predicated region
        $region77: #{tpu_custom_call.1} parent=11 // pred_check
          %p636 = pneg %p442
        $region78: #{tpu_custom_call.1} parent=11 // pred_check_branch
          %638 = sbr.rel (%p636) target = $region80
        $region79: #{tpu_custom_call.1} parent=11 // pred_region
          _
        $region80: #{tpu_custom_call.1} parent=11 // pred_fallthru
          _
        // Predicated region
        $region81: #{tpu_custom_call.1} parent=11 // pred_check
          %p639 = pneg %p463
        $region82: #{tpu_custom_call.1} parent=11 // pred_check_branch
          %641 = sbr.rel (%p639) target = $region84
        $region83: #{tpu_custom_call.1} parent=11 // pred_region
          _
        $region84: #{tpu_custom_call.1} parent=11 // pred_fallthru
          _
        // Predicated region
        $region85: #{tpu_custom_call.1} parent=11 // pred_check
          %p642 = pneg %p484
        $region86: #{tpu_custom_call.1} parent=11 // pred_check_branch
          %644 = sbr.rel (%p642) target = $region88
        $region87: #{tpu_custom_call.1} parent=11 // pred_region
          _
        $region88: #{tpu_custom_call.1} parent=11 // pred_fallthru
          _
        // Predicated region
        $region89: #{tpu_custom_call.1} parent=11 // pred_check
          %p645 = pneg %p505
        $region90: #{tpu_custom_call.1} parent=11 // pred_check_branch
          %647 = sbr.rel (%p645) target = $region92
        $region91: #{tpu_custom_call.1} parent=11 // pred_region
          _
        $region92: #{tpu_custom_call.1} parent=11 // pred_fallthru
          _
        // Predicated region
        $region93: #{tpu_custom_call.1} parent=11 // pred_check
          %p648 = pneg %p526
        $region94: #{tpu_custom_call.1} parent=11 // pred_check_branch
          %650 = sbr.rel (%p648) target = $region96
        $region95: #{tpu_custom_call.1} parent=11 // pred_region
          _
        $region96: #{tpu_custom_call.1} parent=11 // pred_fallthru
          _
        // Predicated region
        $region97: #{tpu_custom_call.1} parent=11 // pred_check
          %p651 = pneg %p547
        $region98: #{tpu_custom_call.1} parent=11 // pred_check_branch
          %653 = sbr.rel (%p651) target = $region100
        $region99: #{tpu_custom_call.1} parent=11 // pred_region
          _
        $region100: #{tpu_custom_call.1} parent=11 // pred_fallthru
          _
      $region12: #{tpu_custom_call.1} parent=5 // pred_fallthru
        _
      %p654 = scmp.lt.s32.totalorder %s33, 2
      // Predicated region
      $region101: #{tpu_custom_call.1} parent=5 // pred_check
        %p655 = pneg %p654
      $region102: #{tpu_custom_call.1} parent=5 // pred_check_branch
        %657 = sbr.rel (%p655) target = $region104
      $region103: #{tpu_custom_call.1} parent=5 // pred_region
        // Predicated region
        $region105: #{tpu_custom_call.1} parent=103 // pred_check
          %p658 = pneg %p53
        $region106: #{tpu_custom_call.1} parent=103 // pred_check_branch
          %660 = sbr.rel (%p658) target = $region108
        $region107: #{tpu_custom_call.1} parent=103 // pred_region
          %p661 = scmp.lt.s32.totalorder %s33, 1
          %s662 = scalar_select %p661, %s33, 1
          %s663 = smul.addr %s662, 8
          %s664 = scalar_lea.vmem %s0, %s663
        $region108: #{tpu_custom_call.1} parent=103 // pred_fallthru
          _
        // Predicated region
        $region109: #{tpu_custom_call.1} parent=103 // pred_check
          %p665 = pneg %p79
        $region110: #{tpu_custom_call.1} parent=103 // pred_check_branch
          %667 = sbr.rel (%p665) target = $region112
        $region111: #{tpu_custom_call.1} parent=103 // pred_region
          %p668 = scmp.lt.s32.totalorder %s33, 1
          %s669 = scalar_select %p668, %s33, 1
          %s670 = smul.addr %s669, 4
          %s671 = scalar_lea.vmem %s1, %s670
        $region112: #{tpu_custom_call.1} parent=103 // pred_fallthru
          _
      $region104: #{tpu_custom_call.1} parent=5 // pred_fallthru
        _
      %p672 = scmp.le.s32.totalorder 1, %s33
      %p673 = scmp.lt.s32.totalorder %s33, 3
      %p674 = pnand %p672, %p673
      %p675 = pneg %p674
      // Predicated region
      $region113: #{tpu_custom_call.1} parent=5 // pred_check
        _
      $region114: #{tpu_custom_call.1} parent=5 // pred_check_branch
        %677 = sbr.rel (%p674) target = $region116
      $region115: #{tpu_custom_call.1} parent=5 // pred_region
        %s678 = ssub.s32 %s33, 1
        %p679 = scmp.lt.s32.totalorder %s38, 1
        %s680 = scalar_select %p679, %s38, 1
        %s681 = smul.addr %s680, 8
        %s682 = scalar_lea.vmem %s0, %s681
        %p683 = pneg %p59
        %p684 = pneg %p56
        %p685 = scmp.lt.s32.totalorder %s38, 1
        %s686 = scalar_select %p685, %s38, 1
        %s687 = smul.addr %s686, 4
        %s688 = scalar_lea.vmem %s1, %s687
        %p689 = pneg %p85
        %p690 = pneg %p82
        %p691 = pneg %p106
        %p692 = pneg %p103
        %p693 = pneg %p127
        %p694 = pneg %p124
        %p695 = pneg %p148
        %p696 = pneg %p145
        %p697 = pneg %p169
        %p698 = pneg %p166
        %p699 = pneg %p190
        %p700 = pneg %p187
        %p701 = pneg %p211
        %p702 = pneg %p208
        %p703 = pneg %p232
        %p704 = pneg %p229
        %p705 = pneg %p253
        %p706 = pneg %p250
        %p707 = pneg %p274
        %p708 = pneg %p271
        %p709 = pneg %p295
        %p710 = pneg %p292
        %p711 = pneg %p316
        %p712 = pneg %p313
        %p713 = pneg %p337
        %p714 = pneg %p334
        %p715 = pneg %p358
        %p716 = pneg %p355
        %p717 = pneg %p379
        %p718 = pneg %p376
        %p719 = pneg %p400
        %p720 = pneg %p397
        %p721 = pneg %p421
        %p722 = pneg %p418
        %p723 = pneg %p442
        %p724 = pneg %p439
        %p725 = pneg %p463
        %p726 = pneg %p460
        %p727 = pneg %p484
        %p728 = pneg %p481
        %p729 = pneg %p505
        %p730 = pneg %p502
        %p731 = pneg %p526
        %p732 = pneg %p523
        %p733 = pneg %p547
        %p734 = pneg %p544
        %p735 = pneg %p573
        %p736 = pneg %p570
        %s737 = sand.u32 %s560, 1
        %s738 = scalar_lea.sflag [#allocation3], %s737
        %s739 = sand.u32 %s560, 1
        %s740 = smul.addr %s739, 8
        %s741 = scalar_lea.vmem [#allocation2], %s740
        %p742 = scmp.lt.s32.totalorder %s38, 1
        %s743 = scalar_select %p742, %s38, 1
        %s744 = smul.addr %s743, 8
        %s745 = scalar_lea.vmem %s0, %s744
        %p746 = scmp.lt.s32.totalorder %s38, 1
        %s747 = scalar_select %p746, %s38, 1
        %s748 = smul.addr %s747, 4
        %s749 = scalar_lea.vmem %s1, %s748
        %v751 = vld [vmem:[%s745] sm:$0xff]
        %v752 = vpack.c.bf16 %v751, %v751
        %v753 = vld [vmem:[%s2] sm:$0xf]
        %v754 = vld [vmem:[%s2 + $0x4] sm:$0xf]
        %v755 = vld [vmem:[%s2 + $0x8] sm:$0xf]
        %v756 = vld [vmem:[%s2 + $0xc] sm:$0xf]
        %v757 = vld [vmem:[%s2 + $0x10] sm:$0xf]
        %v758 = vld [vmem:[%s2 + $0x14] sm:$0xf]
        %v759 = vld [vmem:[%s2 + $0x18] sm:$0xf]
        %v760 = vld [vmem:[%s2 + $0x1c] sm:$0xf]
        %v761 = vld [vmem:[%s3] sm:$0x1]
        %v762 = vld [vmem:[%s3 + $0x1] sm:$0x1]
        %v765 = vlaneseq
        %v766 = vshrl.u32 %v765, 7
        %v767 = vsub.s32 0, %v766
        %v768 = vrot.slane %v761, %v767
        %v769 = vlaneseq
        %v770 = vshrl.u32 %v769, 7
        %v771 = vsub.s32 0, %v770
        %v772 = vrot.slane %v762, %v771
        %v779 = vunpack.c.l.b16 %v753
        %v780 = vunpack.c.l.b16 %v754
        %v781 = vunpack.c.l.b16 %v755
        %v782 = vunpack.c.l.b16 %v756
        %v783 = vpack.c.b16 %v780, %v779
        %v784 = vpack.c.b16 %v782, %v781
        %vm787 = vcmask 261120
        %v789 = vsel %vm787, %v752, 0
        %791 = vmatprep.subr.bf16.mxu0 0
        %792 = vmatpush1.bf16.msra.mxu0 0
        %793 = vmatprep.subr.bf16.mxu0 0
        %794 = vmatpush1.bf16.msra.mxu0 0
        %795 = vmatprep.subr.bf16.mxu0 0
        %796 = vmatpush1.bf16.msra.mxu0 0
        %797 = vmatprep.subr.bf16.mxu0 0
        %798 = vmatpush1.bf16.msra.mxu0 0
        %799 = vmatprep.subr.bf16.mxu0 0
        %800 = vmatpush1.bf16.msra.mxu0 0
        %801 = vmatprep.subr.bf16.mxu0 0
        %802 = vmatpush1.bf16.msra.mxu0 0
        %803 = vmatprep.subr.bf16.mxu0 0
        %804 = vmatpush1.bf16.msra.mxu0 %v784
        %805 = vmatprep.subr.bf16.mxu0 0
        %806 = vmatpush1.bf16.msra.mxu0 %v783
        %807 = vmatprep.subr.bf16.mxu0 0
        %808 = vmatpush2.bf16.msra.mxu0 0
        %809 = vmatprep.subr.bf16.mxu0 0
        %810 = vmatpush2.bf16.msra.mxu0 0
        %811 = vmatprep.subr.bf16.mxu0 0
        %812 = vmatpush2.bf16.msra.mxu0 0
        %813 = vmatprep.subr.bf16.mxu0 0
        %814 = vmatpush2.bf16.msra.mxu0 0
        %815 = vmatprep.subr.bf16.mxu0 0
        %816 = vmatpush2.bf16.msra.mxu0 0
        %817 = vmatprep.subr.bf16.mxu0 0
        %818 = vmatpush2.bf16.msra.mxu0 0
        %819 = vmatprep.subr.bf16.mxu0 0
        %820 = vmatpush2.bf16.msra.mxu0 0
        %821 = vmatprep.subr.bf16.mxu0 0
        %822 = vmatpush2.bf16.msra.mxu0 0
        %823 = vmatprep.mubr.bf16.mxu0 0
        %824 = vmatmul.mubr.bf16.gmra.mxu0 %v789
        %v825 = vpop.f32.mrf.mxu0
        %v826 = vadd.f32 %v768, %v825
        %v827 = vpop.f32.mrf.mxu0
        %v828 = vpop.f32.mrf.mxu0
        %v829 = vpop.f32.mrf.mxu0
        %830 = vdwg.mxu0
        %v835 = vunpack.c.l.b16 %v757
        %v836 = vunpack.c.l.b16 %v758
        %v837 = vunpack.c.l.b16 %v759
        %v838 = vunpack.c.l.b16 %v760
        %v839 = vpack.c.b16 %v836, %v835
        %v840 = vpack.c.b16 %v838, %v837
        %843 = vmatprep.subr.bf16.mxu0 0
        %844 = vmatpush1.bf16.msra.mxu0 0
        %845 = vmatprep.subr.bf16.mxu0 0
        %846 = vmatpush1.bf16.msra.mxu0 0
        %847 = vmatprep.subr.bf16.mxu0 0
        %848 = vmatpush1.bf16.msra.mxu0 0
        %849 = vmatprep.subr.bf16.mxu0 0
        %850 = vmatpush1.bf16.msra.mxu0 0
        %851 = vmatprep.subr.bf16.mxu0 0
        %852 = vmatpush1.bf16.msra.mxu0 0
        %853 = vmatprep.subr.bf16.mxu0 0
        %854 = vmatpush1.bf16.msra.mxu0 0
        %855 = vmatprep.subr.bf16.mxu0 0
        %856 = vmatpush1.bf16.msra.mxu0 %v840
        %857 = vmatprep.subr.bf16.mxu0 0
        %858 = vmatpush1.bf16.msra.mxu0 %v839
        %859 = vmatprep.subr.bf16.mxu0 0
        %860 = vmatpush2.bf16.msra.mxu0 0
        %861 = vmatprep.subr.bf16.mxu0 0
        %862 = vmatpush2.bf16.msra.mxu0 0
        %863 = vmatprep.subr.bf16.mxu0 0
        %864 = vmatpush2.bf16.msra.mxu0 0
        %865 = vmatprep.subr.bf16.mxu0 0
        %866 = vmatpush2.bf16.msra.mxu0 0
        %867 = vmatprep.subr.bf16.mxu0 0
        %868 = vmatpush2.bf16.msra.mxu0 0
        %869 = vmatprep.subr.bf16.mxu0 0
        %870 = vmatpush2.bf16.msra.mxu0 0
        %871 = vmatprep.subr.bf16.mxu0 0
        %872 = vmatpush2.bf16.msra.mxu0 0
        %873 = vmatprep.subr.bf16.mxu0 0
        %874 = vmatpush2.bf16.msra.mxu0 0
        %875 = vmatprep.mubr.bf16.mxu0 0
        %876 = vmatmul.mubr.bf16.gmra.mxu0 %v789
        %v877 = vpop.f32.mrf.mxu0
        %v878 = vadd.f32 %v772, %v877
        %v879 = vpop.f32.mrf.mxu0
        %v880 = vpop.f32.mrf.mxu0
        %v881 = vpop.f32.mrf.mxu0
        %882 = vdwg.mxu0
        %v883 = vld [vmem:[%s4] sm:$0xf]
        %v884 = vld [vmem:[%s4 + $0x4] sm:$0xf]
        %v885 = vld [vmem:[%s4 + $0x8] sm:$0xf]
        %v886 = vld [vmem:[%s4 + $0xc] sm:$0xf]
        %v887 = vld [vmem:[%s4 + $0x10] sm:$0xf]
        %v888 = vld [vmem:[%s4 + $0x14] sm:$0xf]
        %v889 = vld [vmem:[%s4 + $0x18] sm:$0xf]
        %v890 = vld [vmem:[%s4 + $0x1c] sm:$0xf]
        %v891 = vld [vmem:[%s5] sm:$0x1]
        %v892 = vld [vmem:[%s5 + $0x1] sm:$0x1]
        %v895 = vlaneseq
        %v896 = vshrl.u32 %v895, 7
        %v897 = vsub.s32 0, %v896
        %v898 = vrot.slane %v891, %v897
        %v899 = vlaneseq
        %v900 = vshrl.u32 %v899, 7
        %v901 = vsub.s32 0, %v900
        %v902 = vrot.slane %v892, %v901
        %v909 = vunpack.c.l.b16 %v883
        %v910 = vunpack.c.l.b16 %v884
        %v911 = vunpack.c.l.b16 %v885
        %v912 = vunpack.c.l.b16 %v886
        %v913 = vpack.c.b16 %v910, %v909
        %v914 = vpack.c.b16 %v912, %v911
        %917 = vmatprep.subr.bf16.mxu0 0
        %918 = vmatpush1.bf16.msra.mxu0 0
        %919 = vmatprep.subr.bf16.mxu0 0
        %920 = vmatpush1.bf16.msra.mxu0 0
        %921 = vmatprep.subr.bf16.mxu0 0
        %922 = vmatpush1.bf16.msra.mxu0 0
        %923 = vmatprep.subr.bf16.mxu0 0
        %924 = vmatpush1.bf16.msra.mxu0 0
        %925 = vmatprep.subr.bf16.mxu0 0
        %926 = vmatpush1.bf16.msra.mxu0 0
        %927 = vmatprep.subr.bf16.mxu0 0
        %928 = vmatpush1.bf16.msra.mxu0 0
        %929 = vmatprep.subr.bf16.mxu0 0
        %930 = vmatpush1.bf16.msra.mxu0 %v914
        %931 = vmatprep.subr.bf16.mxu0 0
        %932 = vmatpush1.bf16.msra.mxu0 %v913
        %933 = vmatprep.subr.bf16.mxu0 0
        %934 = vmatpush2.bf16.msra.mxu0 0
        %935 = vmatprep.subr.bf16.mxu0 0
        %936 = vmatpush2.bf16.msra.mxu0 0
        %937 = vmatprep.subr.bf16.mxu0 0
        %938 = vmatpush2.bf16.msra.mxu0 0
        %939 = vmatprep.subr.bf16.mxu0 0
        %940 = vmatpush2.bf16.msra.mxu0 0
        %941 = vmatprep.subr.bf16.mxu0 0
        %942 = vmatpush2.bf16.msra.mxu0 0
        %943 = vmatprep.subr.bf16.mxu0 0
        %944 = vmatpush2.bf16.msra.mxu0 0
        %945 = vmatprep.subr.bf16.mxu0 0
        %946 = vmatpush2.bf16.msra.mxu0 0
        %947 = vmatprep.subr.bf16.mxu0 0
        %948 = vmatpush2.bf16.msra.mxu0 0
        %949 = vmatprep.mubr.bf16.mxu0 0
        %950 = vmatmul.mubr.bf16.gmra.mxu0 %v789
        %v951 = vpop.f32.mrf.mxu0
        %v952 = vadd.f32 %v898, %v951
        %v953 = vpop.f32.mrf.mxu0
        %v954 = vpop.f32.mrf.mxu0
        %v955 = vpop.f32.mrf.mxu0
        %956 = vdwg.mxu0
        %v961 = vunpack.c.l.b16 %v887
        %v962 = vunpack.c.l.b16 %v888
        %v963 = vunpack.c.l.b16 %v889
        %v964 = vunpack.c.l.b16 %v890
        %v965 = vpack.c.b16 %v962, %v961
        %v966 = vpack.c.b16 %v964, %v963
        %969 = vmatprep.subr.bf16.mxu0 0
        %970 = vmatpush1.bf16.msra.mxu0 0
        %971 = vmatprep.subr.bf16.mxu0 0
        %972 = vmatpush1.bf16.msra.mxu0 0
        %973 = vmatprep.subr.bf16.mxu0 0
        %974 = vmatpush1.bf16.msra.mxu0 0
        %975 = vmatprep.subr.bf16.mxu0 0
        %976 = vmatpush1.bf16.msra.mxu0 0
        %977 = vmatprep.subr.bf16.mxu0 0
        %978 = vmatpush1.bf16.msra.mxu0 0
        %979 = vmatprep.subr.bf16.mxu0 0
        %980 = vmatpush1.bf16.msra.mxu0 0
        %981 = vmatprep.subr.bf16.mxu0 0
        %982 = vmatpush1.bf16.msra.mxu0 %v966
        %983 = vmatprep.subr.bf16.mxu0 0
        %984 = vmatpush1.bf16.msra.mxu0 %v965
        %985 = vmatprep.subr.bf16.mxu0 0
        %986 = vmatpush2.bf16.msra.mxu0 0
        %987 = vmatprep.subr.bf16.mxu0 0
        %988 = vmatpush2.bf16.msra.mxu0 0
        %989 = vmatprep.subr.bf16.mxu0 0
        %990 = vmatpush2.bf16.msra.mxu0 0
        %991 = vmatprep.subr.bf16.mxu0 0
        %992 = vmatpush2.bf16.msra.mxu0 0
        %993 = vmatprep.subr.bf16.mxu0 0
        %994 = vmatpush2.bf16.msra.mxu0 0
        %995 = vmatprep.subr.bf16.mxu0 0
        %996 = vmatpush2.bf16.msra.mxu0 0
        %997 = vmatprep.subr.bf16.mxu0 0
        %998 = vmatpush2.bf16.msra.mxu0 0
        %999 = vmatprep.subr.bf16.mxu0 0
        %1000 = vmatpush2.bf16.msra.mxu0 0
        %1001 = vmatprep.mubr.bf16.mxu0 0
        %1002 = vmatmul.mubr.bf16.gmra.mxu0 %v789
        %v1003 = vpop.f32.mrf.mxu0
        %v1004 = vadd.f32 %v902, %v1003
        %v1005 = vpop.f32.mrf.mxu0
        %v1006 = vpop.f32.mrf.mxu0
        %v1007 = vpop.f32.mrf.mxu0
        %1008 = vdwg.mxu0
        %v1009 = vld [vmem:[%s6] sm:$0xf]
        %v1010 = vld [vmem:[%s6 + $0x4] sm:$0xf]
        %v1011 = vld [vmem:[%s6 + $0x8] sm:$0xf]
        %v1012 = vld [vmem:[%s6 + $0xc] sm:$0xf]
        %v1013 = vld [vmem:[%s6 + $0x10] sm:$0xf]
        %v1014 = vld [vmem:[%s6 + $0x14] sm:$0xf]
        %v1015 = vld [vmem:[%s6 + $0x18] sm:$0xf]
        %v1016 = vld [vmem:[%s6 + $0x1c] sm:$0xf]
        %v1017 = vld [vmem:[%s7] sm:$0x1]
        %v1018 = vld [vmem:[%s7 + $0x1] sm:$0x1]
        %v1021 = vlaneseq
        %v1022 = vshrl.u32 %v1021, 7
        %v1023 = vsub.s32 0, %v1022
        %v1024 = vrot.slane %v1017, %v1023
        %v1025 = vlaneseq
        %v1026 = vshrl.u32 %v1025, 7
        %v1027 = vsub.s32 0, %v1026
        %v1028 = vrot.slane %v1018, %v1027
        %v1035 = vunpack.c.l.b16 %v1009
        %v1036 = vunpack.c.l.b16 %v1010
        %v1037 = vunpack.c.l.b16 %v1011
        %v1038 = vunpack.c.l.b16 %v1012
        %v1039 = vpack.c.b16 %v1036, %v1035
        %v1040 = vpack.c.b16 %v1038, %v1037
        %1043 = vmatprep.subr.bf16.mxu0 0
        %1044 = vmatpush1.bf16.msra.mxu0 0
        %1045 = vmatprep.subr.bf16.mxu0 0
        %1046 = vmatpush1.bf16.msra.mxu0 0
        %1047 = vmatprep.subr.bf16.mxu0 0
        %1048 = vmatpush1.bf16.msra.mxu0 0
        %1049 = vmatprep.subr.bf16.mxu0 0
        %1050 = vmatpush1.bf16.msra.mxu0 0
        %1051 = vmatprep.subr.bf16.mxu0 0
        %1052 = vmatpush1.bf16.msra.mxu0 0
        %1053 = vmatprep.subr.bf16.mxu0 0
        %1054 = vmatpush1.bf16.msra.mxu0 0
        %1055 = vmatprep.subr.bf16.mxu0 0
        %1056 = vmatpush1.bf16.msra.mxu0 %v1040
        %1057 = vmatprep.subr.bf16.mxu0 0
        %1058 = vmatpush1.bf16.msra.mxu0 %v1039
        %1059 = vmatprep.subr.bf16.mxu0 0
        %1060 = vmatpush2.bf16.msra.mxu0 0
        %1061 = vmatprep.subr.bf16.mxu0 0
        %1062 = vmatpush2.bf16.msra.mxu0 0
        %1063 = vmatprep.subr.bf16.mxu0 0
        %1064 = vmatpush2.bf16.msra.mxu0 0
        %1065 = vmatprep.subr.bf16.mxu0 0
        %1066 = vmatpush2.bf16.msra.mxu0 0
        %1067 = vmatprep.subr.bf16.mxu0 0
        %1068 = vmatpush2.bf16.msra.mxu0 0
        %1069 = vmatprep.subr.bf16.mxu0 0
        %1070 = vmatpush2.bf16.msra.mxu0 0
        %1071 = vmatprep.subr.bf16.mxu0 0
        %1072 = vmatpush2.bf16.msra.mxu0 0
        %1073 = vmatprep.subr.bf16.mxu0 0
        %1074 = vmatpush2.bf16.msra.mxu0 0
        %1075 = vmatprep.mubr.bf16.mxu0 0
        %1076 = vmatmul.mubr.bf16.gmra.mxu0 %v789
        %v1077 = vpop.f32.mrf.mxu0
        %v1078 = vadd.f32 %v1024, %v1077
        %v1079 = vpop.f32.mrf.mxu0
        %v1080 = vpop.f32.mrf.mxu0
        %v1081 = vpop.f32.mrf.mxu0
        %1082 = vdwg.mxu0
        %v1087 = vunpack.c.l.b16 %v1013
        %v1088 = vunpack.c.l.b16 %v1014
        %v1089 = vunpack.c.l.b16 %v1015
        %v1090 = vunpack.c.l.b16 %v1016
        %v1091 = vpack.c.b16 %v1088, %v1087
        %v1092 = vpack.c.b16 %v1090, %v1089
        %1095 = vmatprep.subr.bf16.mxu0 0
        %1096 = vmatpush1.bf16.msra.mxu0 0
        %1097 = vmatprep.subr.bf16.mxu0 0
        %1098 = vmatpush1.bf16.msra.mxu0 0
        %1099 = vmatprep.subr.bf16.mxu0 0
        %1100 = vmatpush1.bf16.msra.mxu0 0
        %1101 = vmatprep.subr.bf16.mxu0 0
        %1102 = vmatpush1.bf16.msra.mxu0 0
        %1103 = vmatprep.subr.bf16.mxu0 0
        %1104 = vmatpush1.bf16.msra.mxu0 0
        %1105 = vmatprep.subr.bf16.mxu0 0
        %1106 = vmatpush1.bf16.msra.mxu0 0
        %1107 = vmatprep.subr.bf16.mxu0 0
        %1108 = vmatpush1.bf16.msra.mxu0 %v1092
        %1109 = vmatprep.subr.bf16.mxu0 0
        %1110 = vmatpush1.bf16.msra.mxu0 %v1091
        %1111 = vmatprep.subr.bf16.mxu0 0
        %1112 = vmatpush2.bf16.msra.mxu0 0
        %1113 = vmatprep.subr.bf16.mxu0 0
        %1114 = vmatpush2.bf16.msra.mxu0 0
        %1115 = vmatprep.subr.bf16.mxu0 0
        %1116 = vmatpush2.bf16.msra.mxu0 0
        %1117 = vmatprep.subr.bf16.mxu0 0
        %1118 = vmatpush2.bf16.msra.mxu0 0
        %1119 = vmatprep.subr.bf16.mxu0 0
        %1120 = vmatpush2.bf16.msra.mxu0 0
        %1121 = vmatprep.subr.bf16.mxu0 0
        %1122 = vmatpush2.bf16.msra.mxu0 0
        %1123 = vmatprep.subr.bf16.mxu0 0
        %1124 = vmatpush2.bf16.msra.mxu0 0
        %1125 = vmatprep.subr.bf16.mxu0 0
        %1126 = vmatpush2.bf16.msra.mxu0 0
        %1127 = vmatprep.mubr.bf16.mxu0 0
        %1128 = vmatmul.mubr.bf16.gmra.mxu0 %v789
        %v1129 = vpop.f32.mrf.mxu0
        %v1130 = vadd.f32 %v1028, %v1129
        %v1131 = vpop.f32.mrf.mxu0
        %v1132 = vpop.f32.mrf.mxu0
        %v1133 = vpop.f32.mrf.mxu0
        %1134 = vdwg.mxu0
        %v1135 = vpack.c.bf16 %v826, %v826
        %v1136 = vpack.c.bf16 %v878, %v878
        %v1137 = vpack.c.bf16 %v952, %v952
        %v1138 = vpack.c.bf16 %v1004, %v1004
        %v1139 = vpack.c.bf16 %v1078, %v1078
        %v1140 = vpack.c.bf16 %v1130, %v1130
        %v1141 = vld [vmem:[%s749] sm:$0xf]
        %v1142 = vunpack.c.l.bf16 %v1141
        %v1143 = vsub.f32 %v1142, 1.0
        %v1144 = vmul.f32 %v1143, 1e+09
        %vm1145 = vcmask 130048
        %v1147 = vsel %vm1145, %v1135, 0
        %v1150 = vsel %vm1145, %v1137, 0
        %1152 = vmatprep.subr.bf16.mxu0 0
        %1153 = vmatpush1.bf16.xpose.msra.mxu0 0
        %1154 = vmatprep.subr.bf16.mxu0 0
        %1155 = vmatpush1.bf16.xpose.msra.mxu0 0
        %1156 = vmatprep.subr.bf16.mxu0 0
        %1157 = vmatpush1.bf16.xpose.msra.mxu0 0
        %1158 = vmatprep.subr.bf16.mxu0 0
        %1159 = vmatpush1.bf16.xpose.msra.mxu0 0
        %1160 = vmatprep.subr.bf16.mxu0 0
        %1161 = vmatpush1.bf16.xpose.msra.mxu0 0
        %1162 = vmatprep.subr.bf16.mxu0 0
        %1163 = vmatpush1.bf16.xpose.msra.mxu0 0
        %1164 = vmatprep.subr.bf16.mxu0 0
        %1165 = vmatpush1.bf16.xpose.msra.mxu0 0
        %1166 = vmatprep.subr.bf16.mxu0 0
        %1167 = vmatpush1.bf16.xpose.msra.mxu0 %v1150
        %1168 = vmatprep.subr.bf16.mxu0 0
        %1169 = vmatpush2.bf16.xpose.msra.mxu0 0
        %1170 = vmatprep.subr.bf16.mxu0 0
        %1171 = vmatpush2.bf16.xpose.msra.mxu0 0
        %1172 = vmatprep.subr.bf16.mxu0 0
        %1173 = vmatpush2.bf16.xpose.msra.mxu0 0
        %1174 = vmatprep.subr.bf16.mxu0 0
        %1175 = vmatpush2.bf16.xpose.msra.mxu0 0
        %1176 = vmatprep.subr.bf16.mxu0 0
        %1177 = vmatpush2.bf16.xpose.msra.mxu0 0
        %1178 = vmatprep.subr.bf16.mxu0 0
        %1179 = vmatpush2.bf16.xpose.msra.mxu0 0
        %1180 = vmatprep.subr.bf16.mxu0 0
        %1181 = vmatpush2.bf16.xpose.msra.mxu0 0
        %1182 = vmatprep.subr.bf16.mxu0 0
        %1183 = vmatpush2.bf16.xpose.msra.mxu0 0
        %1184 = vmatprep.mubr.bf16.mxu0 0
        %1185 = vmatmul.mubr.bf16.gmra.mxu0 %v1147
        %v1186 = vpop.f32.mrf.mxu0
        %v1187 = vadd.f32 %v1144, %v1186
        %v1188 = vpop.f32.mrf.mxu0
        %v1189 = vpop.f32.mrf.mxu0
        %v1190 = vpop.f32.mrf.mxu0
        %1191 = vdwg.mxu0
        %v1193 = vsel %vm1145, %v1136, 0
        %v1196 = vsel %vm1145, %v1138, 0
        %1198 = vmatprep.subr.bf16.mxu0 0
        %1199 = vmatpush1.bf16.xpose.msra.mxu0 0
        %1200 = vmatprep.subr.bf16.mxu0 0
        %1201 = vmatpush1.bf16.xpose.msra.mxu0 0
        %1202 = vmatprep.subr.bf16.mxu0 0
        %1203 = vmatpush1.bf16.xpose.msra.mxu0 0
        %1204 = vmatprep.subr.bf16.mxu0 0
        %1205 = vmatpush1.bf16.xpose.msra.mxu0 0
        %1206 = vmatprep.subr.bf16.mxu0 0
        %1207 = vmatpush1.bf16.xpose.msra.mxu0 0
        %1208 = vmatprep.subr.bf16.mxu0 0
        %1209 = vmatpush1.bf16.xpose.msra.mxu0 0
        %1210 = vmatprep.subr.bf16.mxu0 0
        %1211 = vmatpush1.bf16.xpose.msra.mxu0 0
        %1212 = vmatprep.subr.bf16.mxu0 0
        %1213 = vmatpush1.bf16.xpose.msra.mxu0 %v1196
        %1214 = vmatprep.subr.bf16.mxu0 0
        %1215 = vmatpush2.bf16.xpose.msra.mxu0 0
        %1216 = vmatprep.subr.bf16.mxu0 0
        %1217 = vmatpush2.bf16.xpose.msra.mxu0 0
        %1218 = vmatprep.subr.bf16.mxu0 0
        %1219 = vmatpush2.bf16.xpose.msra.mxu0 0
        %1220 = vmatprep.subr.bf16.mxu0 0
        %1221 = vmatpush2.bf16.xpose.msra.mxu0 0
        %1222 = vmatprep.subr.bf16.mxu0 0
        %1223 = vmatpush2.bf16.xpose.msra.mxu0 0
        %1224 = vmatprep.subr.bf16.mxu0 0
        %1225 = vmatpush2.bf16.xpose.msra.mxu0 0
        %1226 = vmatprep.subr.bf16.mxu0 0
        %1227 = vmatpush2.bf16.xpose.msra.mxu0 0
        %1228 = vmatprep.subr.bf16.mxu0 0
        %1229 = vmatpush2.bf16.xpose.msra.mxu0 0
        %1230 = vmatprep.mubr.bf16.mxu0 0
        %1231 = vmatmul.mubr.bf16.gmra.mxu0 %v1193
        %v1232 = vpop.f32.mrf.mxu0
        %v1233 = vadd.f32 %v1144, %v1232
        %v1234 = vpop.f32.mrf.mxu0
        %v1235 = vpop.f32.mrf.mxu0
        %v1236 = vpop.f32.mrf.mxu0
        %1237 = vdwg.mxu0
        %vm1238 = vcmask 64512
        %v1239 = vsel %vm1238, %v1187, -inf
        %1240 = vmax.xlane.f32.xlu0 %v1239
        %v1241 = vpop.xlane.xlu0 %1240
        %v1242 = vsel %vm1238, %v1233, -inf
        %1243 = vmax.xlane.f32.xlu0 %v1242
        %v1244 = vpop.xlane.xlu0 %1243
        %v1245 = vsub.f32 %v1187, %v1241
        %v1246 = vsub.f32 %v1233, %v1244
        %v1247 = vmul.f32 %v1245, 1.442695
        %v1248 = vpow.pop %v1247
        %v1249 = vmul.f32 %v1246, 1.442695
        %v1250 = vpow.pop %v1249
        %v1251 = vsel %vm1238, %v1248, 0.0
        %1252 = vadd.xlane.f32.xlu0 %v1251
        %v1253 = vpop.xlane.xlu0 %1252
        %v1254 = vsel %vm1238, %v1250, 0.0
        %1255 = vadd.xlane.f32.xlu0 %v1254
        %v1256 = vpop.xlane.xlu0 %1255
        %v1257 = vrcp.pop %v1253
        %v1258 = vrcp.pop %v1256
        %v1259 = vpack.c.bf16 %v1248, %v1248
        %v1260 = vpack.c.bf16 %v1250, %v1250
        %v1262 = vsel %vm1238, %v1259, 0
        %vm1264 = vcmask 1043456
        %v1266 = vsel %vm1264, %v1139, 0
        %1268 = vmatprep.subr.bf16.mxu0 0
        %1269 = vmatpush1.bf16.msra.mxu0 0
        %1270 = vmatprep.subr.bf16.mxu0 0
        %1271 = vmatpush1.bf16.msra.mxu0 0
        %1272 = vmatprep.subr.bf16.mxu0 0
        %1273 = vmatpush1.bf16.msra.mxu0 0
        %1274 = vmatprep.subr.bf16.mxu0 0
        %1275 = vmatpush1.bf16.msra.mxu0 0
        %1276 = vmatprep.subr.bf16.mxu0 0
        %1277 = vmatpush1.bf16.msra.mxu0 0
        %1278 = vmatprep.subr.bf16.mxu0 0
        %1279 = vmatpush1.bf16.msra.mxu0 0
        %1280 = vmatprep.subr.bf16.mxu0 0
        %1281 = vmatpush1.bf16.msra.mxu0 0
        %1282 = vmatprep.subr.bf16.mxu0 0
        %1283 = vmatpush1.bf16.msra.mxu0 %v1266
        %1284 = vmatprep.subr.bf16.mxu0 0
        %1285 = vmatpush2.bf16.msra.mxu0 0
        %1286 = vmatprep.subr.bf16.mxu0 0
        %1287 = vmatpush2.bf16.msra.mxu0 0
        %1288 = vmatprep.subr.bf16.mxu0 0
        %1289 = vmatpush2.bf16.msra.mxu0 0
        %1290 = vmatprep.subr.bf16.mxu0 0
        %1291 = vmatpush2.bf16.msra.mxu0 0
        %1292 = vmatprep.subr.bf16.mxu0 0
        %1293 = vmatpush2.bf16.msra.mxu0 0
        %1294 = vmatprep.subr.bf16.mxu0 0
        %1295 = vmatpush2.bf16.msra.mxu0 0
        %1296 = vmatprep.subr.bf16.mxu0 0
        %1297 = vmatpush2.bf16.msra.mxu0 0
        %1298 = vmatprep.subr.bf16.mxu0 0
        %1299 = vmatpush2.bf16.msra.mxu0 0
        %1300 = vmatprep.mubr.bf16.mxu0 0
        %1301 = vmatmul.mubr.bf16.gmra.mxu0 %v1262
        %v1302 = vpop.f32.mrf.mxu0
        %v1303 = vadd.f32 0.0, %v1302
        %v1304 = vpop.f32.mrf.mxu0
        %v1305 = vpop.f32.mrf.mxu0
        %v1306 = vpop.f32.mrf.mxu0
        %1307 = vdwg.mxu0
        %v1309 = vsel %vm1238, %v1260, 0
        %v1312 = vsel %vm1264, %v1140, 0
        %1314 = vmatprep.subr.bf16.mxu0 0
        %1315 = vmatpush1.bf16.msra.mxu0 0
        %1316 = vmatprep.subr.bf16.mxu0 0
        %1317 = vmatpush1.bf16.msra.mxu0 0
        %1318 = vmatprep.subr.bf16.mxu0 0
        %1319 = vmatpush1.bf16.msra.mxu0 0
        %1320 = vmatprep.subr.bf16.mxu0 0
        %1321 = vmatpush1.bf16.msra.mxu0 0
        %1322 = vmatprep.subr.bf16.mxu0 0
        %1323 = vmatpush1.bf16.msra.mxu0 0
        %1324 = vmatprep.subr.bf16.mxu0 0
        %1325 = vmatpush1.bf16.msra.mxu0 0
        %1326 = vmatprep.subr.bf16.mxu0 0
        %1327 = vmatpush1.bf16.msra.mxu0 0
        %1328 = vmatprep.subr.bf16.mxu0 0
        %1329 = vmatpush1.bf16.msra.mxu0 %v1312
        %1330 = vmatprep.subr.bf16.mxu0 0
        %1331 = vmatpush2.bf16.msra.mxu0 0
        %1332 = vmatprep.subr.bf16.mxu0 0
        %1333 = vmatpush2.bf16.msra.mxu0 0
        %1334 = vmatprep.subr.bf16.mxu0 0
        %1335 = vmatpush2.bf16.msra.mxu0 0
        %1336 = vmatprep.subr.bf16.mxu0 0
        %1337 = vmatpush2.bf16.msra.mxu0 0
        %1338 = vmatprep.subr.bf16.mxu0 0
        %1339 = vmatpush2.bf16.msra.mxu0 0
        %1340 = vmatprep.subr.bf16.mxu0 0
        %1341 = vmatpush2.bf16.msra.mxu0 0
        %1342 = vmatprep.subr.bf16.mxu0 0
        %1343 = vmatpush2.bf16.msra.mxu0 0
        %1344 = vmatprep.subr.bf16.mxu0 0
        %1345 = vmatpush2.bf16.msra.mxu0 0
        %1346 = vmatprep.mubr.bf16.mxu0 0
        %1347 = vmatmul.mubr.bf16.gmra.mxu0 %v1309
        %v1348 = vpop.f32.mrf.mxu0
        %v1349 = vadd.f32 0.0, %v1348
        %v1350 = vpop.f32.mrf.mxu0
        %v1351 = vpop.f32.mrf.mxu0
        %v1352 = vpop.f32.mrf.mxu0
        %1353 = vdwg.mxu0
        %v1354 = vmul.f32 %v1303, %v1257
        %v1355 = vmul.f32 %v1349, %v1258
        %v1356 = vpack.c.bf16 %v1354, %v1354
        %v1357 = vpack.c.bf16 %v1355, %v1355
        %v1358 = vld [vmem:[%s8] sm:$0xf]
        %v1359 = vld [vmem:[%s8 + $0x4] sm:$0xf]
        %v1360 = vld [vmem:[%s8 + $0x8] sm:$0xf]
        %v1361 = vld [vmem:[%s8 + $0xc] sm:$0xf]
        %v1364 = vunpack.c.l.b16 %v1358
        %v1365 = vunpack.c.l.b16 %v1359
        %v1366 = vpack.c.b16 %v1365, %v1364
        %v1369 = vsel %vm1145, %v1356, 0
        %1371 = vmatprep.subr.bf16.mxu0 0
        %1372 = vmatpush1.bf16.msra.mxu0 0
        %1373 = vmatprep.subr.bf16.mxu0 0
        %1374 = vmatpush1.bf16.msra.mxu0 0
        %1375 = vmatprep.subr.bf16.mxu0 0
        %1376 = vmatpush1.bf16.msra.mxu0 0
        %1377 = vmatprep.subr.bf16.mxu0 0
        %1378 = vmatpush1.bf16.msra.mxu0 0
        %1379 = vmatprep.subr.bf16.mxu0 0
        %1380 = vmatpush1.bf16.msra.mxu0 0
        %1381 = vmatprep.subr.bf16.mxu0 0
        %1382 = vmatpush1.bf16.msra.mxu0 0
        %1383 = vmatprep.subr.bf16.mxu0 0
        %1384 = vmatpush1.bf16.msra.mxu0 0
        %1385 = vmatprep.subr.bf16.mxu0 0
        %1386 = vmatpush1.bf16.msra.mxu0 %v1366
        %1387 = vmatprep.subr.bf16.mxu0 0
        %1388 = vmatpush2.bf16.msra.mxu0 0
        %1389 = vmatprep.subr.bf16.mxu0 0
        %1390 = vmatpush2.bf16.msra.mxu0 0
        %1391 = vmatprep.subr.bf16.mxu0 0
        %1392 = vmatpush2.bf16.msra.mxu0 0
        %1393 = vmatprep.subr.bf16.mxu0 0
        %1394 = vmatpush2.bf16.msra.mxu0 0
        %1395 = vmatprep.subr.bf16.mxu0 0
        %1396 = vmatpush2.bf16.msra.mxu0 0
        %1397 = vmatprep.subr.bf16.mxu0 0
        %1398 = vmatpush2.bf16.msra.mxu0 0
        %1399 = vmatprep.subr.bf16.mxu0 0
        %1400 = vmatpush2.bf16.msra.mxu0 0
        %1401 = vmatprep.subr.bf16.mxu0 0
        %1402 = vmatpush2.bf16.msra.mxu0 0
        %1403 = vmatprep.mubr.bf16.mxu0 0
        %1404 = vmatmul.mubr.bf16.gmra.mxu0 %v1369
        %v1405 = vpop.f32.mrf.mxu0
        %v1406 = vadd.f32 0.0, %v1405
        %v1407 = vpop.f32.mrf.mxu0
        %v1408 = vpop.f32.mrf.mxu0
        %v1409 = vpop.f32.mrf.mxu0
        %1410 = vdwg.mxu0
        %v1413 = vunpack.c.l.b16 %v1360
        %v1414 = vunpack.c.l.b16 %v1361
        %v1415 = vpack.c.b16 %v1414, %v1413
        %v1418 = vsel %vm1145, %v1357, 0
        %1420 = vmatprep.subr.bf16.mxu0 0
        %1421 = vmatpush1.bf16.msra.mxu0 0
        %1422 = vmatprep.subr.bf16.mxu0 0
        %1423 = vmatpush1.bf16.msra.mxu0 0
        %1424 = vmatprep.subr.bf16.mxu0 0
        %1425 = vmatpush1.bf16.msra.mxu0 0
        %1426 = vmatprep.subr.bf16.mxu0 0
        %1427 = vmatpush1.bf16.msra.mxu0 0
        %1428 = vmatprep.subr.bf16.mxu0 0
        %1429 = vmatpush1.bf16.msra.mxu0 0
        %1430 = vmatprep.subr.bf16.mxu0 0
        %1431 = vmatpush1.bf16.msra.mxu0 0
        %1432 = vmatprep.subr.bf16.mxu0 0
        %1433 = vmatpush1.bf16.msra.mxu0 0
        %1434 = vmatprep.subr.bf16.mxu0 0
        %1435 = vmatpush1.bf16.msra.mxu0 %v1415
        %1436 = vmatprep.subr.bf16.mxu0 0
        %1437 = vmatpush2.bf16.msra.mxu0 0
        %1438 = vmatprep.subr.bf16.mxu0 0
        %1439 = vmatpush2.bf16.msra.mxu0 0
        %1440 = vmatprep.subr.bf16.mxu0 0
        %1441 = vmatpush2.bf16.msra.mxu0 0
        %1442 = vmatprep.subr.bf16.mxu0 0
        %1443 = vmatpush2.bf16.msra.mxu0 0
        %1444 = vmatprep.subr.bf16.mxu0 0
        %1445 = vmatpush2.bf16.msra.mxu0 0
        %1446 = vmatprep.subr.bf16.mxu0 0
        %1447 = vmatpush2.bf16.msra.mxu0 0
        %1448 = vmatprep.subr.bf16.mxu0 0
        %1449 = vmatpush2.bf16.msra.mxu0 0
        %1450 = vmatprep.subr.bf16.mxu0 0
        %1451 = vmatpush2.bf16.msra.mxu0 0
        %1452 = vmatprep.mubr.bf16.mxu0 0
        %1453 = vmatmul.mubr.bf16.gmra.mxu0 %v1418
        %v1454 = vpop.f32.mrf.mxu0
        %v1455 = vadd.f32 0.0, %v1454
        %v1456 = vpop.f32.mrf.mxu0
        %v1457 = vpop.f32.mrf.mxu0
        %v1458 = vpop.f32.mrf.mxu0
        %1459 = vdwg.mxu0
        %v1460 = vadd.f32 %v1406, %v1455
        %v1461 = vld [vmem:[%s9] sm:$0x1]
        %v1463 = vlaneseq
        %v1464 = vshrl.u32 %v1463, 7
        %v1465 = vsub.s32 0, %v1464
        %v1466 = vrot.slane %v1461, %v1465
        %v1468 = vadd.f32 %v1460, %v1466
        %v1469 = vadd.f32 %v751, %v1468
        %v1470 = vld [vmem:[%s10] sm:$0x1]
        %v1471 = vld [vmem:[%s11] sm:$0x1]
        %v1472 = vsel %vm787, %v1469, 0.0
        %1473 = vadd.xlane.f32.xlu0 %v1472
        %v1474 = vpop.xlane.xlu0 %1473
        %v1475 = vrcp.pop 32.0
        %v1476 = vmul.f32 %v1474, %v1475
        %v1477 = vsub.f32 %v1469, %v1476
        %v1478 = vmul.f32 %v1477, %v1477
        %v1479 = vsel %vm787, %v1478, 0.0
        %1480 = vadd.xlane.f32.xlu0 %v1479
        %v1481 = vpop.xlane.xlu0 %1480
        %v1482 = vmul.f32 %v1481, %v1475
        %v1483 = vadd.f32 %v1482, 1e-06
        %v1484 = vrsqrt.pop %v1483
        %v1485 = vmul.f32 %v1477, %v1484
        %v1487 = vlaneseq
        %v1488 = vshrl.u32 %v1487, 7
        %v1489 = vsub.s32 0, %v1488
        %v1490 = vrot.slane %v1470, %v1489
        %v1492 = vmul.f32 %v1485, %v1490
        %v1494 = vlaneseq
        %v1495 = vshrl.u32 %v1494, 7
        %v1496 = vsub.s32 0, %v1495
        %v1497 = vrot.slane %v1471, %v1496
        %v1499 = vadd.f32 %v1492, %v1497
        %v1500 = vpack.c.bf16 %v1499, %v1499
        %v1501 = vld [vmem:[%s12] sm:$0xf]
        %v1502 = vld [vmem:[%s12 + $0x4] sm:$0xf]
        %v1503 = vld [vmem:[%s12 + $0x8] sm:$0xf]
        %v1504 = vld [vmem:[%s12 + $0xc] sm:$0xf]
        %v1505 = vld [vmem:[%s13] sm:$0x1]
        %v1507 = vlaneseq
        %v1508 = vshrl.u32 %v1507, 7
        %v1509 = vsub.s32 0, %v1508
        %v1510 = vrot.slane %v1505, %v1509
        %v1516 = vunpack.c.l.b16 %v1501
        %v1517 = vunpack.c.l.b16 %v1502
        %v1518 = vunpack.c.l.b16 %v1503
        %v1519 = vunpack.c.l.b16 %v1504
        %v1520 = vpack.c.b16 %v1517, %v1516
        %v1521 = vpack.c.b16 %v1519, %v1518
        %v1525 = vsel %vm787, %v1500, 0
        %1527 = vmatprep.subr.bf16.mxu0 0
        %1528 = vmatpush1.bf16.msra.mxu0 0
        %1529 = vmatprep.subr.bf16.mxu0 0
        %1530 = vmatpush1.bf16.msra.mxu0 0
        %1531 = vmatprep.subr.bf16.mxu0 0
        %1532 = vmatpush1.bf16.msra.mxu0 0
        %1533 = vmatprep.subr.bf16.mxu0 0
        %1534 = vmatpush1.bf16.msra.mxu0 0
        %1535 = vmatprep.subr.bf16.mxu0 0
        %1536 = vmatpush1.bf16.msra.mxu0 0
        %1537 = vmatprep.subr.bf16.mxu0 0
        %1538 = vmatpush1.bf16.msra.mxu0 0
        %1539 = vmatprep.subr.bf16.mxu0 0
        %1540 = vmatpush1.bf16.msra.mxu0 %v1521
        %1541 = vmatprep.subr.bf16.mxu0 0
        %1542 = vmatpush1.bf16.msra.mxu0 %v1520
        %1543 = vmatprep.subr.bf16.mxu0 0
        %1544 = vmatpush2.bf16.msra.mxu0 0
        %1545 = vmatprep.subr.bf16.mxu0 0
        %1546 = vmatpush2.bf16.msra.mxu0 0
        %1547 = vmatprep.subr.bf16.mxu0 0
        %1548 = vmatpush2.bf16.msra.mxu0 0
        %1549 = vmatprep.subr.bf16.mxu0 0
        %1550 = vmatpush2.bf16.msra.mxu0 0
        %1551 = vmatprep.subr.bf16.mxu0 0
        %1552 = vmatpush2.bf16.msra.mxu0 0
        %1553 = vmatprep.subr.bf16.mxu0 0
        %1554 = vmatpush2.bf16.msra.mxu0 0
        %1555 = vmatprep.subr.bf16.mxu0 0
        %1556 = vmatpush2.bf16.msra.mxu0 0
        %1557 = vmatprep.subr.bf16.mxu0 0
        %1558 = vmatpush2.bf16.msra.mxu0 0
        %1559 = vmatprep.mubr.bf16.mxu0 0
        %1560 = vmatmul.mubr.bf16.gmra.mxu0 %v1525
        %v1561 = vpop.f32.mrf.mxu0
        %v1562 = vadd.f32 %v1510, %v1561
        %v1563 = vpop.f32.mrf.mxu0
        %v1564 = vpop.f32.mrf.mxu0
        %v1565 = vpop.f32.mrf.mxu0
        %1566 = vdwg.mxu0
        %v1567 = vmul.f32 %v1562, %v1562
        %v1568 = vmul.f32 %v1562, %v1567
        %v1569 = vmul.f32 %v1568, 0.044715
        %v1570 = vadd.f32 %v1562, %v1569
        %v1571 = vmul.f32 %v1570, 0.7978846
        %v1572 = vtanh.pop %v1571
        %v1573 = vadd.f32 %v1572, 1.0
        %v1574 = vmul.f32 %v1573, 0.5
        %v1575 = vmul.f32 %v1562, %v1574
        %v1576 = vpack.c.bf16 %v1575, %v1575
        %v1577 = vld [vmem:[%s14] sm:$0xf]
        %v1578 = vld [vmem:[%s14 + $0x4] sm:$0xf]
        %v1579 = vld [vmem:[%s14 + $0x8] sm:$0xf]
        %v1580 = vld [vmem:[%s14 + $0xc] sm:$0xf]
        %v1581 = vld [vmem:[%s14 + $0x10] sm:$0xf]
        %v1582 = vld [vmem:[%s14 + $0x14] sm:$0xf]
        %v1583 = vld [vmem:[%s14 + $0x18] sm:$0xf]
        %v1584 = vld [vmem:[%s14 + $0x1c] sm:$0xf]
        %v1585 = vld [vmem:[%s15] sm:$0x1]
        %v1587 = vlaneseq
        %v1588 = vshrl.u32 %v1587, 7
        %v1589 = vsub.s32 0, %v1588
        %v1590 = vrot.slane %v1585, %v1589
        %v1600 = vunpack.c.l.b16 %v1577
        %v1601 = vunpack.c.l.b16 %v1578
        %v1602 = vunpack.c.l.b16 %v1579
        %v1603 = vunpack.c.l.b16 %v1580
        %v1604 = vunpack.c.l.b16 %v1581
        %v1605 = vunpack.c.l.b16 %v1582
        %v1606 = vunpack.c.l.b16 %v1583
        %v1607 = vunpack.c.l.b16 %v1584
        %v1608 = vpack.c.b16 %v1601, %v1600
        %v1609 = vpack.c.b16 %v1603, %v1602
        %v1610 = vpack.c.b16 %v1605, %v1604
        %v1611 = vpack.c.b16 %v1607, %v1606
        %vm1616 = vcmask 523264
        %v1618 = vsel %vm1616, %v1576, 0
        %1620 = vmatprep.subr.bf16.mxu0 0
        %1621 = vmatpush1.bf16.msra.mxu0 0
        %1622 = vmatprep.subr.bf16.mxu0 0
        %1623 = vmatpush1.bf16.msra.mxu0 0
        %1624 = vmatprep.subr.bf16.mxu0 0
        %1625 = vmatpush1.bf16.msra.mxu0 0
        %1626 = vmatprep.subr.bf16.mxu0 0
        %1627 = vmatpush1.bf16.msra.mxu0 0
        %1628 = vmatprep.subr.bf16.mxu0 0
        %1629 = vmatpush1.bf16.msra.mxu0 %v1611
        %1630 = vmatprep.subr.bf16.mxu0 0
        %1631 = vmatpush1.bf16.msra.mxu0 %v1610
        %1632 = vmatprep.subr.bf16.mxu0 0
        %1633 = vmatpush1.bf16.msra.mxu0 %v1609
        %1634 = vmatprep.subr.bf16.mxu0 0
        %1635 = vmatpush1.bf16.msra.mxu0 %v1608
        %1636 = vmatprep.subr.bf16.mxu0 0
        %1637 = vmatpush2.bf16.msra.mxu0 0
        %1638 = vmatprep.subr.bf16.mxu0 0
        %1639 = vmatpush2.bf16.msra.mxu0 0
        %1640 = vmatprep.subr.bf16.mxu0 0
        %1641 = vmatpush2.bf16.msra.mxu0 0
        %1642 = vmatprep.subr.bf16.mxu0 0
        %1643 = vmatpush2.bf16.msra.mxu0 0
        %1644 = vmatprep.subr.bf16.mxu0 0
        %1645 = vmatpush2.bf16.msra.mxu0 0
        %1646 = vmatprep.subr.bf16.mxu0 0
        %1647 = vmatpush2.bf16.msra.mxu0 0
        %1648 = vmatprep.subr.bf16.mxu0 0
        %1649 = vmatpush2.bf16.msra.mxu0 0
        %1650 = vmatprep.subr.bf16.mxu0 0
        %1651 = vmatpush2.bf16.msra.mxu0 0
        %1652 = vmatprep.mubr.bf16.mxu0 0
        %1653 = vmatmul.mubr.bf16.gmra.mxu0 %v1618
        %v1654 = vpop.f32.mrf.mxu0
        %v1655 = vadd.f32 %v1590, %v1654
        %v1656 = vpop.f32.mrf.mxu0
        %v1657 = vpop.f32.mrf.mxu0
        %v1658 = vpop.f32.mrf.mxu0
        %1659 = vdwg.mxu0
        %v1660 = vadd.f32 %v1499, %v1655
        %v1661 = vld [vmem:[%s16] sm:$0x1]
        %v1662 = vld [vmem:[%s17] sm:$0x1]
        %v1663 = vsel %vm787, %v1660, 0.0
        %1664 = vadd.xlane.f32.xlu0 %v1663
        %v1665 = vpop.xlane.xlu0 %1664
        %v1666 = vmul.f32 %v1665, %v1475
        %v1667 = vsub.f32 %v1660, %v1666
        %v1668 = vmul.f32 %v1667, %v1667
        %v1669 = vsel %vm787, %v1668, 0.0
        %1670 = vadd.xlane.f32.xlu0 %v1669
        %v1671 = vpop.xlane.xlu0 %1670
        %v1672 = vmul.f32 %v1671, %v1475
        %v1673 = vadd.f32 %v1672, 1e-06
        %v1674 = vrsqrt.pop %v1673
        %v1675 = vmul.f32 %v1667, %v1674
        %v1677 = vlaneseq
        %v1678 = vshrl.u32 %v1677, 7
        %v1679 = vsub.s32 0, %v1678
        %v1680 = vrot.slane %v1661, %v1679
        %v1682 = vmul.f32 %v1675, %v1680
        %v1684 = vlaneseq
        %v1685 = vshrl.u32 %v1684, 7
        %v1686 = vsub.s32 0, %v1685
        %v1687 = vrot.slane %v1662, %v1686
        %v1689 = vadd.f32 %v1682, %v1687
        %v1690 = vpack.c.bf16 %v1689, %v1689
        %v1691 = vld [vmem:[%s18] sm:$0xf]
        %v1692 = vld [vmem:[%s18 + $0x4] sm:$0xf]
        %v1693 = vld [vmem:[%s18 + $0x8] sm:$0xf]
        %v1694 = vld [vmem:[%s18 + $0xc] sm:$0xf]
        %v1695 = vld [vmem:[%s19] sm:$0x1]
        %v1697 = vlaneseq
        %v1698 = vshrl.u32 %v1697, 7
        %v1699 = vsub.s32 0, %v1698
        %v1700 = vrot.slane %v1695, %v1699
        %v1706 = vunpack.c.l.b16 %v1691
        %v1707 = vunpack.c.l.b16 %v1692
        %v1708 = vunpack.c.l.b16 %v1693
        %v1709 = vunpack.c.l.b16 %v1694
        %v1710 = vpack.c.b16 %v1707, %v1706
        %v1711 = vpack.c.b16 %v1709, %v1708
        %v1715 = vsel %vm787, %v1690, 0
        %1717 = vmatprep.subr.bf16.mxu0 0
        %1718 = vmatpush1.bf16.msra.mxu0 0
        %1719 = vmatprep.subr.bf16.mxu0 0
        %1720 = vmatpush1.bf16.msra.mxu0 0
        %1721 = vmatprep.subr.bf16.mxu0 0
        %1722 = vmatpush1.bf16.msra.mxu0 0
        %1723 = vmatprep.subr.bf16.mxu0 0
        %1724 = vmatpush1.bf16.msra.mxu0 0
        %1725 = vmatprep.subr.bf16.mxu0 0
        %1726 = vmatpush1.bf16.msra.mxu0 0
        %1727 = vmatprep.subr.bf16.mxu0 0
        %1728 = vmatpush1.bf16.msra.mxu0 0
        %1729 = vmatprep.subr.bf16.mxu0 0
        %1730 = vmatpush1.bf16.msra.mxu0 %v1711
        %1731 = vmatprep.subr.bf16.mxu0 0
        %1732 = vmatpush1.bf16.msra.mxu0 %v1710
        %1733 = vmatprep.subr.bf16.mxu0 0
        %1734 = vmatpush2.bf16.msra.mxu0 0
        %1735 = vmatprep.subr.bf16.mxu0 0
        %1736 = vmatpush2.bf16.msra.mxu0 0
        %1737 = vmatprep.subr.bf16.mxu0 0
        %1738 = vmatpush2.bf16.msra.mxu0 0
        %1739 = vmatprep.subr.bf16.mxu0 0
        %1740 = vmatpush2.bf16.msra.mxu0 0
        %1741 = vmatprep.subr.bf16.mxu0 0
        %1742 = vmatpush2.bf16.msra.mxu0 0
        %1743 = vmatprep.subr.bf16.mxu0 0
        %1744 = vmatpush2.bf16.msra.mxu0 0
        %1745 = vmatprep.subr.bf16.mxu0 0
        %1746 = vmatpush2.bf16.msra.mxu0 0
        %1747 = vmatprep.subr.bf16.mxu0 0
        %1748 = vmatpush2.bf16.msra.mxu0 0
        %1749 = vmatprep.mubr.bf16.mxu0 0
        %1750 = vmatmul.mubr.bf16.gmra.mxu0 %v1715
        %v1751 = vpop.f32.mrf.mxu0
        %v1752 = vadd.f32 %v1700, %v1751
        %v1753 = vpop.f32.mrf.mxu0
        %v1754 = vpop.f32.mrf.mxu0
        %v1755 = vpop.f32.mrf.mxu0
        %1756 = vdwg.mxu0
        %v1757 = vmax.f32 %v1752, 0.0
        %v1758 = vpack.c.bf16 %v1757, %v1757
        %v1759 = vld [vmem:[%s20] sm:$0xf]
        %v1760 = vld [vmem:[%s21] sm:$0x1]
        %v1762 = vlaneseq
        %v1763 = vshrl.u32 %v1762, 7
        %v1764 = vsub.s32 0, %v1763
        %v1765 = vrot.slane %v1760, %v1764
        %v1768 = vsel %vm1238, %v1758, 0
        %v1771 = vsel %vm1264, %v1759, 0
        %1773 = vmatprep.subr.bf16.mxu0 0
        %1774 = vmatpush1.bf16.msra.mxu0 0
        %1775 = vmatprep.subr.bf16.mxu0 0
        %1776 = vmatpush1.bf16.msra.mxu0 0
        %1777 = vmatprep.subr.bf16.mxu0 0
        %1778 = vmatpush1.bf16.msra.mxu0 0
        %1779 = vmatprep.subr.bf16.mxu0 0
        %1780 = vmatpush1.bf16.msra.mxu0 0
        %1781 = vmatprep.subr.bf16.mxu0 0
        %1782 = vmatpush1.bf16.msra.mxu0 0
        %1783 = vmatprep.subr.bf16.mxu0 0
        %1784 = vmatpush1.bf16.msra.mxu0 0
        %1785 = vmatprep.subr.bf16.mxu0 0
        %1786 = vmatpush1.bf16.msra.mxu0 0
        %1787 = vmatprep.subr.bf16.mxu0 0
        %1788 = vmatpush1.bf16.msra.mxu0 %v1771
        %1789 = vmatprep.subr.bf16.mxu0 0
        %1790 = vmatpush2.bf16.msra.mxu0 0
        %1791 = vmatprep.subr.bf16.mxu0 0
        %1792 = vmatpush2.bf16.msra.mxu0 0
        %1793 = vmatprep.subr.bf16.mxu0 0
        %1794 = vmatpush2.bf16.msra.mxu0 0
        %1795 = vmatprep.subr.bf16.mxu0 0
        %1796 = vmatpush2.bf16.msra.mxu0 0
        %1797 = vmatprep.subr.bf16.mxu0 0
        %1798 = vmatpush2.bf16.msra.mxu0 0
        %1799 = vmatprep.subr.bf16.mxu0 0
        %1800 = vmatpush2.bf16.msra.mxu0 0
        %1801 = vmatprep.subr.bf16.mxu0 0
        %1802 = vmatpush2.bf16.msra.mxu0 0
        %1803 = vmatprep.subr.bf16.mxu0 0
        %1804 = vmatpush2.bf16.msra.mxu0 0
        %1805 = vmatprep.mubr.bf16.mxu0 0
        %1806 = vmatmul.mubr.bf16.gmra.mxu0 %v1768
        %v1807 = vpop.f32.mrf.mxu0
        %v1808 = vadd.f32 %v1765, %v1807
        %v1809 = vpop.f32.mrf.mxu0
        %v1810 = vpop.f32.mrf.mxu0
        %v1811 = vpop.f32.mrf.mxu0
        %1812 = vdwg.mxu0
        %v1813 = vadd.f32 %v1689, %v1808
        %v1814 = vadd.f32 %v1813, %v1655
        %v1815 = vadd.f32 %v1814, %v1499
        %v1816 = vld [vmem:[%s22] sm:$0x1]
        %v1817 = vld [vmem:[%s23] sm:$0x1]
        %v1818 = vsel %vm787, %v1815, 0.0
        %1819 = vadd.xlane.f32.xlu0 %v1818
        %v1820 = vpop.xlane.xlu0 %1819
        %v1821 = vmul.f32 %v1820, %v1475
        %v1822 = vsub.f32 %v1815, %v1821
        %v1823 = vmul.f32 %v1822, %v1822
        %v1824 = vsel %vm787, %v1823, 0.0
        %1825 = vadd.xlane.f32.xlu0 %v1824
        %v1826 = vpop.xlane.xlu0 %1825
        %v1827 = vmul.f32 %v1826, %v1475
        %v1828 = vadd.f32 %v1827, 1e-06
        %v1829 = vrsqrt.pop %v1828
        %v1830 = vmul.f32 %v1822, %v1829
        %v1832 = vlaneseq
        %v1833 = vshrl.u32 %v1832, 7
        %v1834 = vsub.s32 0, %v1833
        %v1835 = vrot.slane %v1816, %v1834
        %v1837 = vmul.f32 %v1830, %v1835
        %v1839 = vlaneseq
        %v1840 = vshrl.u32 %v1839, 7
        %v1841 = vsub.s32 0, %v1840
        %v1842 = vrot.slane %v1817, %v1841
        %v1844 = vadd.f32 %v1837, %v1842
        %1845 = vst.msk [vmem:[%s741] sm:$0xff] %vm787, %v1844
        %s1846 = sand.u32 %s560, 1
        %s1847 = scalar_lea.sflag [#allocation3], %s1846
        %s1848 = sand.u32 %s560, 1
        %s1849 = smul.addr %s1848, 8
        %s1850 = scalar_lea.vmem [#allocation2], %s1849
        // Predicated region
        $region117: #{tpu_custom_call.1} parent=115 // pred_check
          %p1851 = pneg %p570
        $region118: #{tpu_custom_call.1} parent=115 // pred_check_branch
          %1853 = sbr.rel (%p1851) target = $region120
        $region119: #{tpu_custom_call.1} parent=115 // pred_region
          %s1855 = ssub.s32 128, 128
          %1856 = vsyncadd %s1847, %s1855
          %s1857 = smul.addr %s38, 128
          %s1858 = scalar_lea.hbm %s24, %s1857
          %s1860 = sshll.u32 %s1850, 4
          %s1861 = int_to_ptr.vmem [resolvable:$true] %s1860
          %1863 = dma.vmem_to_hbm [thread:$0]  %s1861, 128, %s1858, %s1847
        $region120: #{tpu_custom_call.1} parent=115 // pred_fallthru
          _
      $region116: #{tpu_custom_call.1} parent=5 // pred_fallthru
        _
      %p1864 = scmp.le.s32.totalorder 2, %s33
      // Predicated region
      $region121: #{tpu_custom_call.1} parent=5 // pred_check
        %p1865 = pneg %p1864
      $region122: #{tpu_custom_call.1} parent=5 // pred_check_branch
        %1867 = sbr.rel (%p1865) target = $region124
      $region123: #{tpu_custom_call.1} parent=5 // pred_region
        %s1868 = ssub.s32 %s33, 2
        // Predicated region
        $region125: #{tpu_custom_call.1} parent=123 // pred_check
          %p1869 = pneg %p576
        $region126: #{tpu_custom_call.1} parent=123 // pred_check_branch
          %1871 = sbr.rel (%p1869) target = $region128
        $region127: #{tpu_custom_call.1} parent=123 // pred_region
          %s1872 = sand.u32 %s561, 1
          %s1873 = scalar_lea.sflag [#allocation3], %s1872
          %s1874 = sand.u32 %s561, 1
          %s1875 = smul.addr %s1874, 8
          %s1876 = scalar_lea.vmem [#allocation2], %s1875
          %1877 = dma.done %s1873, 128
        $region128: #{tpu_custom_call.1} parent=123 // pred_fallthru
          _
      $region124: #{tpu_custom_call.1} parent=5 // pred_fallthru
        _
    $region6: #{tpu_custom_call.1} parent=1 // loop_footer
      %s37 = sadd.s32 1, %s33
    $region7: #{tpu_custom_call.1} parent=1 // loop_footer_branch
      %32 = sbr.rel target = $region3
    $region8: #{tpu_custom_call.1} parent=1 // loop_exit
      _
    %1878 = vsyncpa [#allocation3], 1
    %s1879 = scalar_lea.sflag [#allocation3], 1
    %1880 = vsyncpa %s1879, 1

</llo_original>
